<compile_context>
chip_gen: v5e
topology: v5e:2x2
jax: 0.10.0
libtpu: 0.0.40
codegen_flags: <defaults>
</compile_context>

<pallas_src>
import functools
from typing import NamedTuple

import numpy as np
import jax
import jax.numpy as jnp
from jax import lax
from jax.experimental import pallas as pl
from jax.experimental.pallas import tpu as pltpu

ALPHA = 0.25  # nn.PReLU default init value (all PReLUs in the model)


def _apply_act(v, act, alpha):
    if act == "prelu":
        return jnp.where(v >= 0, v, alpha * v)
    if act == "relu":
        return jnp.maximum(v, 0.0)
    if act == "sigmoid":
        return jax.nn.sigmoid(v)
    return v


# ---------------------------------------------------------------------------
# Chain spec (static config of one fused conv-chain pallas_call)
# ---------------------------------------------------------------------------
class StageSpec(NamedTuple):
    offsets: tuple   # ((dh, dw), ...) kernel taps (all dilation groups flat)
    cin: int
    cin_p: int       # channel count padded for staging alignment
    cout: int
    act: str         # activation applied after this stage (non-final stages)


class ChainSpec(NamedTuple):
    stages: tuple    # 1 or 2 StageSpecs
    gate: str        # "none" | "ca" | "eca"  (applied to the last conv output)
    pregate: bool    # ECA+PReLU gate applied to the kernel INPUT (fuse2 + PR)
    has_scale: bool  # elementwise multiply in the epilogue (ASM h*x2)
    res: str         # "none" | "input" | "extra"
    final_act: str
    H: int
    W: int


def _round_up(v, m):
    return ((v + m - 1) // m) * m


def _pad_of(offsets, W):
    return max((abs(dh * W + dw) for dh, dw in offsets), default=0)


def _stage_pads(spec):
    return tuple(_pad_of(st.offsets, spec.W) for st in spec.stages)


def _dw_rows(stages):
    dws = sorted({dw for st in stages for (_dh, dw) in st.offsets if dw != 0})
    return {dw: i for i, dw in enumerate(dws)}


def _hscratch_pad(spec):
    p1 = _pad_of(spec.stages[1].offsets, spec.W)
    return 0 if p1 == 0 else _round_up(p1, 128)


# ---------------------------------------------------------------------------
# Fused conv-chain kernel
#   one grid step == one image, channel-major (C, HW) layout
# ---------------------------------------------------------------------------
def _chain_kernel(*refs, spec):
    stages = spec.stages
    S = len(stages)
    W = spec.W
    hw = spec.H * spec.W
    pads = _stage_pads(spec)
    dwmap = _dw_rows(stages)
    has_masks = bool(dwmap)
    has_k = any(len(st.offsets) > 1 for st in stages)
    n_gate = {"ca": 2, "eca": 1}.get(spec.gate, 0)
    p1r = _hscratch_pad(spec) if S == 2 else 0

    refs = list(refs)
    i = 0
    x_ref = refs[i]; i += 1
    wb = []
    for _ in range(S):
        wb.append((refs[i], refs[i + 1])); i += 2
    m_ref = refs[i] if has_masks else None; i += int(has_masks)
    pre_ref = refs[i] if spec.pregate else None; i += int(spec.pregate)
    gate_refs = tuple(refs[i:i + n_gate]); i += n_gate
    sc_ref = refs[i] if spec.has_scale else None; i += int(spec.has_scale)
    r_ref = refs[i] if spec.res == "extra" else None; i += int(spec.res == "extra")
    o_ref = refs[i]; i += 1
    k_ref = refs[i] if has_k else None; i += int(has_k)
    h_ref = refs[i] if S == 2 else None

    def masked(v, dw):
        if dw == 0:
            return v
        # column-validity mask: row OOB is handled by the lane zero padding.
        return v * m_ref[pl.ds(dwmap[dw], 1), :]

    # Optional ECA+PReLU pre-gate on the kernel input (NET.fuse2 + NET.PR fused
    # into the following conv).
    g0 = None
    if spec.pregate:
        xc = x_ref[0, :, pl.ds(pads[0], hw)]
        mu = jnp.mean(xc, axis=1, keepdims=True)
        g0 = jax.nn.sigmoid(jnp.dot(pre_ref[...], mu,
                                    preferred_element_type=jnp.float32))

    def window(s, start):
        if s == 0:
            v = x_ref[0, :, pl.ds(start, hw)]
            if g0 is not None:
                v = _apply_act(v * g0, "prelu", ALPHA)
            return v
        return h_ref[:, pl.ds(start, hw)]

    acc = None
    for s, st in enumerate(stages):
        w_ref, b_ref = wb[s]
        offs = st.offsets
        T = len(offs)
        cin_p = st.cin_p
        base = pads[0] if s == 0 else p1r
        if T == 1:
            dh, dw = offs[0]
            xk = masked(window(s, base + dh * W + dw), dw).astype(w_ref.dtype)
        else:
            # pack taps (bf16) along the contraction axis -> one big-K GEMM
            for t, (dh, dw) in enumerate(offs):
                v = masked(window(s, base + dh * W + dw), dw)
                k_ref[pl.ds(t * cin_p, cin_p), :] = v.astype(k_ref.dtype)
            xk = k_ref[pl.ds(0, T * cin_p), :]
        acc = lax.dot_general(w_ref[...], xk, (((1,), (0,)), ((), ())),
                              preferred_element_type=jnp.float32)
        acc = acc + b_ref[...]
        if s + 1 < S:
            hact = _apply_act(acc, st.act, ALPHA)
            if p1r:
                zer = jnp.zeros((st.cout, p1r), jnp.float32)
                h_ref[:, pl.ds(0, p1r)] = zer
                h_ref[:, pl.ds(p1r + hw, p1r)] = zer
            h_ref[:, pl.ds(p1r, hw)] = hact        # 128-aligned center store

    if spec.gate == "ca":        # CALayer gate from global-avg-pool of conv out
        w1_ref, w2_ref = gate_refs
        mu = jnp.mean(acc, axis=1, keepdims=True)
        hid = jnp.maximum(jnp.dot(w1_ref[...], mu,
                                  preferred_element_type=jnp.float32), 0.0)
        acc = acc * jax.nn.sigmoid(jnp.dot(w2_ref[...], hid,
                                           preferred_element_type=jnp.float32))
    elif spec.gate == "eca":     # eca_layer: k=3 conv over channels as band mat
        (band_ref,) = gate_refs
        mu = jnp.mean(acc, axis=1, keepdims=True)
        acc = acc * jax.nn.sigmoid(jnp.dot(band_ref[...], mu,
                                           preferred_element_type=jnp.float32))
    if sc_ref is not None:
        acc = acc * sc_ref[0]
    if spec.res == "input":
        acc = acc + x_ref[0, :, pl.ds(pads[0], hw)]
    elif spec.res == "extra":
        acc = acc + r_ref[0]
    o_ref[0] = _apply_act(acc, spec.final_act, ALPHA)


@functools.partial(jax.jit, static_argnames=("spec",))
def _chain_impl(x, ws, bs, gate_arrs, pre_band, scale, res, *, spec):
    stages = spec.stages
    S = len(stages)
    N = x.shape[0]
    H, W = spec.H, spec.W
    hw = H * W
    pads = _stage_pads(spec)
    st0 = stages[0]
    cout = stages[-1].cout
    if spec.res == "input":
        assert st0.cin == cout and st0.cin_p == cout

    xf = x.reshape(N, st0.cin, hw)
    if st0.cin_p != st0.cin or pads[0]:
        xf = jnp.pad(xf, ((0, 0), (0, st0.cin_p - st0.cin),
                          (pads[0], pads[0])))
    hwp = hw + 2 * pads[0]

    dwmap = _dw_rows(stages)
    masks = None
    if dwmap:
        cc = np.arange(hw) % W
        rows = np.stack([((cc + dw >= 0) & (cc + dw < W)).astype(np.float32)
                         for dw in sorted(dwmap)])
        masks = jnp.asarray(rows)                    # (n_dw, HW), dense

    in_specs = [pl.BlockSpec((1, st0.cin_p, hwp), lambda n: (n, 0, 0))]
    args = [xf]
    for s, st in enumerate(stages):
        K = len(st.offsets) * st.cin_p
        in_specs += [pl.BlockSpec((st.cout, K), lambda n: (0, 0)),
                     pl.BlockSpec((st.cout, 1), lambda n: (0, 0))]
        args += [ws[s], bs[s]]
    if masks is not None:
        in_specs.append(pl.BlockSpec(masks.shape, lambda n: (0, 0)))
        args.append(masks)
    if spec.pregate:
        in_specs.append(pl.BlockSpec(pre_band.shape, lambda n: (0, 0)))
        args.append(pre_band)
    if spec.gate != "none":
        for g in gate_arrs:
            in_specs.append(pl.BlockSpec(g.shape, lambda n: (0, 0)))
            args.append(g)
    if spec.has_scale:
        in_specs.append(pl.BlockSpec((1, cout, hw), lambda n: (n, 0, 0)))
        args.append(scale.reshape(N, cout, hw))
    if spec.res == "extra":
        in_specs.append(pl.BlockSpec((1, cout, hw), lambda n: (n, 0, 0)))
        args.append(res.reshape(N, cout, hw))

    scratch = []
    maxK = max((len(st.offsets) * st.cin_p for st in stages
                if len(st.offsets) > 1), default=0)
    if maxK:
        scratch.append(pltpu.VMEM((maxK, hw), jnp.bfloat16))
    if S == 2:
        scratch.append(pltpu.VMEM(
            (stages[0].cout, hw + 2 * _hscratch_pad(spec)), jnp.float32))

    out = pl.pallas_call(
        functools.partial(_chain_kernel, spec=spec),
        out_shape=jax.ShapeDtypeStruct((N, cout, hw), jnp.float32),
        grid=(N,),
        in_specs=in_specs,
        out_specs=pl.BlockSpec((1, cout, hw), lambda n: (n, 0, 0)),
        scratch_shapes=scratch,
        compiler_params=pltpu.CompilerParams(
            dimension_semantics=("parallel",)),
    )(*args)
    return out.reshape(N, cout, H, W)


# ---------------------------------------------------------------------------
# User-facing wrappers
# ---------------------------------------------------------------------------
def _mk_stage(c, act):
    return StageSpec(offsets=c["offsets"], cin=c["cin"], cin_p=c["cin_p"],
                     cout=c["cout"], act=act)


def conv_block(x, c, *, act="none", gate="none", gate_p=(), pregate=None,
               scale=None, residual=None, res_from_input=False):
    spec = ChainSpec(
        stages=(_mk_stage(c, "none"),), gate=gate,
        pregate=pregate is not None, has_scale=scale is not None,
        res=("input" if res_from_input
             else ("extra" if residual is not None else "none")),
        final_act=act, H=int(x.shape[2]), W=int(x.shape[3]))
    return _chain_impl(x, (c["w"],), (c["b"],), tuple(gate_p), pregate, scale,
                       None if res_from_input else residual, spec=spec)


def conv_chain2(x, c1, act1, c2, *, act="none", gate="none", gate_p=(),
                scale=None, residual=None, res_from_input=False):
    assert c2["cin"] == c1["cout"] and c2["cin_p"] == c1["cout"]
    spec = ChainSpec(
        stages=(_mk_stage(c1, act1), _mk_stage(c2, "none")), gate=gate,
        pregate=False, has_scale=scale is not None,
        res=("input" if res_from_input
             else ("extra" if residual is not None else "none")),
        final_act=act, H=int(x.shape[2]), W=int(x.shape[3]))
    return _chain_impl(x, (c1["w"], c2["w"]), (c1["b"], c2["b"]),
                       tuple(gate_p), None, scale,
                       None if res_from_input else residual, spec=spec)


# ---------------------------------------------------------------------------
# Bilinear resampling (nn.Upsample, align_corners=False) - layout glue in JAX
# TODO(synk): bilinear resampling / patch concat kept in plain JAX.
# ---------------------------------------------------------------------------
@jax.jit
def bilinear_down2(x):
    # scale_factor=0.5, bilinear, align_corners=False == 2x2 average pooling
    N, C, H, W = x.shape
    return x.reshape(N, C, H // 2, 2, W // 2, 2).mean(axis=(3, 5))


@jax.jit
def bilinear_up2(x):
    def up_axis(a, axis):
        n = a.shape[axis]
        first = lax.slice_in_dim(a, 0, 1, axis=axis)
        last = lax.slice_in_dim(a, n - 1, n, axis=axis)
        prev = jnp.concatenate(
            [first, lax.slice_in_dim(a, 0, n - 1, axis=axis)], axis=axis)
        nxt = jnp.concatenate(
            [lax.slice_in_dim(a, 1, n, axis=axis), last], axis=axis)
        even = 0.25 * prev + 0.75 * a
        odd = 0.75 * a + 0.25 * nxt
        out = jnp.stack([even, odd], axis=axis + 1)
        shp = list(a.shape)
        shp[axis] = 2 * n
        return out.reshape(shp)

    return up_axis(up_axis(x, 2), 3)


# ---------------------------------------------------------------------------
# Module forward functions (compositions of the fused kernels)
# ---------------------------------------------------------------------------
def cab_forward(x, p):
    # conv1+PReLU -> conv2 -> CALayer gate -> +x, single pallas_call
    return conv_chain2(x, p["c1"], "prelu", p["c2"],
                       gate="ca", gate_p=(p["w1"], p["w2"]),
                       res_from_input=True)


def resblock_forward(x, p):
    # conv+PReLU -> conv2 -> +x -> PReLU, single pallas_call
    return conv_chain2(x, p["c1"], "prelu", p["c2"], act="prelu",
                       res_from_input=True)


def fuse_forward(x, p):
    # conv_d1+conv_d3+conv_d5 (+bias) -> ECA gate -> +x -> PReLU, one kernel
    return conv_block(x, p["conv"], act="prelu", gate="eca",
                      gate_p=(p["band"],), res_from_input=True)


def rb_forward(x, p):
    for rp in p["res"]:
        x = resblock_forward(x, rp)
    return fuse_forward(x, p["fuse"])


def encoder_forward(x, p):
    for c in p["l1"]:
        x = cab_forward(x, c)
    enc1 = x
    x = conv_block(bilinear_down2(enc1), p["down12"])
    for c in p["l2"]:
        x = cab_forward(x, c)
    enc2 = x
    x = conv_block(bilinear_down2(enc2), p["down23"])
    for c in p["l3"]:
        x = cab_forward(x, c)
    return [enc1, enc2, x]


def decoder_forward(outs, p):
    enc1, enc2, enc3 = outs
    x = enc3
    for c in p["l3"]:
        x = cab_forward(x, c)
    dec3 = x
    skip2 = cab_forward(enc2, p["skip2"])
    x = conv_block(bilinear_up2(dec3), p["up32"], residual=skip2)
    for c in p["l2"]:
        x = cab_forward(x, c)
    dec2 = x
    skip1 = cab_forward(enc1, p["skip1"])
    x = conv_block(bilinear_up2(dec2), p["up21"], residual=skip1)
    for c in p["l1"]:
        x = cab_forward(x, c)
    dec1 = x
    return [dec1, dec2, dec3]


def asm_forward(x, x_img, p):
    x1 = conv_block(x, p["conv1"])                      # conv1(x), reused twice
    img = x1 + x_img   # TODO(synk): tiny (N,3,HW) pointwise add left in JAX
    x2 = conv_block(img, p["conv2"], act="sigmoid")
    h = conv_chain2(x1, p["c3a"], "prelu", p["c3b"], act="prelu")
    # last conv of conv3 with `h*x2 + x` folded into its epilogue
    return conv_block(h, p["c3c"], scale=x2, residual=x)


def edsubnet_forward(inp, p):
    N, C, H, W = inp.shape
    h2, w2 = H // 2, W // 2
    # Batch the 4 patches on the batch axis: shallow + encoder run once.
    patches = jnp.concatenate(
        [inp[:, :, :h2, :w2], inp[:, :, :h2, w2:],
         inp[:, :, h2:, :w2], inp[:, :, h2:, w2:]], axis=0)   # (4N, 3, h2, w2)

    y = conv_block(patches, p["shallow_conv"])
    y = cab_forward(y, p["shallow_cab"])
    feats = encoder_forward(y, p["enc"])                      # each (4N, C, h, w)

    def reassemble(f):
        lt, rt, lb, rb = jnp.split(f, 4, axis=0)
        top = jnp.concatenate([lt, rt], axis=3)
        bot = jnp.concatenate([lb, rb], axis=3)
        return jnp.concatenate([top, bot], axis=2)

    feat = [reassemble(f) for f in feats]
    res = decoder_forward(feat, p["dec"])
    # TODO(synk): original EDSubnet.forward calls `self.amm` (nonexistent attr,
    # typo for `self.asm`); the ASM module is used as intended.
    return asm_forward(res[0], inp, p["asm"])


def net_forward(x, params):
    # x: (N, 3, H, W) NCHW, same convention as the PyTorch module
    x1 = conv_block(x, params["conv1"], act="prelu")
    subout = edsubnet_forward(x, params["sub"])
    h = conv_block(jnp.concatenate([x1, subout], axis=1), params["cat"])
    for rb in params["RB"]:
        h = rb_forward(h, rb)
    # fuse2 (ECA) + PReLU folded into conv2 as an input pre-gate
    return conv_block(h, params["conv2"], pregate=params["fuse2_band"])


# ---------------------------------------------------------------------------
# Deterministic parameter construction (synthetic weights)
# ---------------------------------------------------------------------------
def _kg(key):
    while True:
        key, sub = jax.random.split(key)
        yield sub


def init_conv(kg, cin, cout, k=3, dils=(1,), bias=False):
    c = k // 2
    offs = tuple((d * (i - c), d * (j - c))
                 for d in dils for i in range(k) for j in range(k))
    T = len(offs)
    # pad Cin to a 16-sublane multiple so bf16 tap blocks stay tile-aligned
    cin_p = cin if T == 1 else ((cin + 15) // 16) * 16
    w = jax.random.normal(next(kg), (cout, T, cin),
                          jnp.float32) / np.sqrt(cin * T)
    if cin_p != cin:
        w = jnp.pad(w, ((0, 0), (0, 0), (0, cin_p - cin)))
    wdtype = jnp.bfloat16 if T > 1 else jnp.float32
    w = w.reshape(cout, T * cin_p).astype(wdtype)
    b = (jax.random.normal(next(kg), (cout, 1), jnp.float32) * 0.05 if bias
         else jnp.zeros((cout, 1), jnp.float32))
    return {"w": w, "b": b, "offsets": offs,
            "cin": cin, "cin_p": cin_p, "cout": cout}


def init_eca_band(kg, c):
    # eca_layer Conv1d(1,1,3,padding=1,bias=False) as a hoisted band matrix
    w3 = jax.random.normal(next(kg), (3,), jnp.float32) / np.sqrt(3.0)
    return (w3[1] * jnp.eye(c, dtype=jnp.float32)
            + w3[0] * jnp.eye(c, k=-1, dtype=jnp.float32)
            + w3[2] * jnp.eye(c, k=1, dtype=jnp.float32))


def init_cab(kg, nf, red=4):
    return {"c1": init_conv(kg, nf, nf, 3),
            "c2": init_conv(kg, nf, nf, 3),
            "w1": jax.random.normal(next(kg), (nf // red, nf),
                                    jnp.float32) / np.sqrt(nf),
            "w2": jax.random.normal(next(kg), (nf, nf // red),
                                    jnp.float32) / np.sqrt(nf // red)}


def init_encoder(kg, nf=32, s=16):
    return {"l1": [init_cab(kg, nf) for _ in range(2)],
            "l2": [init_cab(kg, nf + s) for _ in range(2)],
            "l3": [init_cab(kg, nf + 2 * s) for _ in range(2)],
            "down12": init_conv(kg, nf, nf + s, 1),
            "down23": init_conv(kg, nf + s, nf + 2 * s, 1)}


def init_decoder(kg, nf=32, s=16):
    return {"l1": [init_cab(kg, nf) for _ in range(2)],
            "l2": [init_cab(kg, nf + s) for _ in range(2)],
            "l3": [init_cab(kg, nf + 2 * s) for _ in range(2)],
            "skip1": init_cab(kg, nf),
            "skip2": init_cab(kg, nf + s),
            "up21": init_conv(kg, nf + s, nf, 1),
            "up32": init_conv(kg, nf + 2 * s, nf + s, 1)}


def init_asm(kg, nf=32):
    return {"conv1": init_conv(kg, nf, 3, 1),
            "conv2": init_conv(kg, 3, nf, 1),
            "c3a": init_conv(kg, 3, nf, 1),
            "c3b": init_conv(kg, nf, nf, 1),
            "c3c": init_conv(kg, nf, nf, 1)}


def init_resblock(kg):
    return {"c1": init_conv(kg, 32, 32, 3), "c2": init_conv(kg, 32, 32, 3)}


def init_fuse(kg, nf=32):
    # three dilated convs (d=1,3,5) as one 27-tap conv; biases sum anyway
    return {"conv": init_conv(kg, nf, nf, 3, dils=(1, 3, 5), bias=True),
            "band": init_eca_band(kg, nf)}


def init_rb(kg):
    return {"res": [init_resblock(kg) for _ in range(3)],
            "fuse": init_fuse(kg)}


def init_net_params(key):
    kg = _kg(key)
    return {"conv1": init_conv(kg, 3, 32, 3),
            "cat": init_conv(kg, 64, 32, 3),
            "conv2": init_conv(kg, 32, 3, 3),
            "fuse2_band": init_eca_band(kg, 32),
            "RB": [init_rb(kg) for _ in range(6)],
            "sub": {"shallow_conv": init_conv(kg, 3, 32, 3),
                    "shallow_cab": init_cab(kg, 32),
                    "enc": init_encoder(kg),
                    "dec": init_decoder(kg),
                    "asm": init_asm(kg)}}


# ---------------------------------------------------------------------------
if __name__ == "__main__":
    params = init_net_params(jax.random.PRNGKey(1))
    x = jax.random.normal(jax.random.PRNGKey(0), (2, 3, 32, 32), jnp.float32)

    out = net_forward(x, params)
    out = jax.block_until_ready(out)

    assert out.shape == (2, 3, 32, 32), out.shape
    assert bool(jnp.all(jnp.isfinite(out)))
    print("KERNEL_OK")
</pallas_src>

<mosaic_0001>
module attributes {stable_mosaic.version = 11 : i64} {
  func.func @_chain_kernel(%arg0: i32, %arg1: memref<1x16x1090xf32, #tpu.memory_space<vmem>>, %arg2: memref<32x144xbf16, #tpu.memory_space<vmem>>, %arg3: memref<32x1xf32, #tpu.memory_space<vmem>>, %arg4: memref<2x1024xf32, #tpu.memory_space<vmem>>, %arg5: memref<1x32x1024xf32, #tpu.memory_space<vmem>>, %arg6: memref<144x1024xbf16, #tpu.memory_space<vmem>>) attributes {dimension_semantics = [#tpu.dimension_semantics<parallel>], iteration_bounds = array<i64: 2>, scalar_prefetch = 0 : i64, scratch_operands = 1 : i64, tpu.core_type = #tpu.core_type<tc>, window_params = [{transform_indices = @transform_0, window_bounds = array<i64: 1, 16, 1090>}, {pipeline_mode = #tpu.pipeline_mode<synchronous>, transform_indices = @transform_1, window_bounds = array<i64: 32, 144>}, {pipeline_mode = #tpu.pipeline_mode<synchronous>, transform_indices = @transform_2, window_bounds = array<i64: 32, 1>}, {pipeline_mode = #tpu.pipeline_mode<synchronous>, transform_indices = @transform_3, window_bounds = array<i64: 2, 1024>}, {transform_indices = @transform_4, window_bounds = array<i64: 1, 32, 1024>}]} {
    %c0 = arith.constant 0 : index
    %c0_0 = arith.constant 0 : index
    %c0_1 = arith.constant 0 : index
    %0 = vector.load %arg1[%c0, %c0_0, %c0_1] : memref<1x16x1090xf32, #tpu.memory_space<vmem>>, vector<1x16x1024xf32>
    %1 = vector.shape_cast %0 : vector<1x16x1024xf32> to vector<16x1024xf32>
    %c0_2 = arith.constant 0 : index
    %c0_3 = arith.constant 0 : index
    %2 = vector.load %arg4[%c0_2, %c0_3] : memref<2x1024xf32, #tpu.memory_space<vmem>>, vector<1x1024xf32>
    %3 = vector.broadcast %2 : vector<1x1024xf32> to vector<16x1024xf32>
    %4 = arith.mulf %1, %3 : vector<16x1024xf32>
    %5 = arith.truncf %4 : vector<16x1024xf32> to vector<16x1024xbf16>
    %c0_4 = arith.constant 0 : index
    %c0_5 = arith.constant 0 : index
    %6 = vector.load %arg6[%c0_4, %c0_5] : memref<144x1024xbf16, #tpu.memory_space<vmem>>, vector<16x1024xbf16>
    tpu.vector_store %arg6[%c0_4, %c0_5], %5 {strides = array<i32>} : memref<144x1024xbf16, #tpu.memory_space<vmem>>, vector<16x1024xbf16>,
    %c0_6 = arith.constant 0 : index
    %c0_7 = arith.constant 0 : index
    %c1 = arith.constant 1 : index
    %7 = vector.load %arg1[%c0_6, %c0_7, %c1] : memref<1x16x1090xf32, #tpu.memory_space<vmem>>, vector<1x16x1024xf32>
    %8 = vector.shape_cast %7 : vector<1x16x1024xf32> to vector<16x1024xf32>
    %9 = arith.truncf %8 : vector<16x1024xf32> to vector<16x1024xbf16>
    %c16 = arith.constant 16 : index
    %c0_8 = arith.constant 0 : index
    %10 = vector.load %arg6[%c16, %c0_8] : memref<144x1024xbf16, #tpu.memory_space<vmem>>, vector<16x1024xbf16>
    tpu.vector_store %arg6[%c16, %c0_8], %9 {strides = array<i32>} : memref<144x1024xbf16, #tpu.memory_space<vmem>>, vector<16x1024xbf16>,
    %c0_9 = arith.constant 0 : index
    %c0_10 = arith.constant 0 : index
    %c2 = arith.constant 2 : index
    %11 = vector.load %arg1[%c0_9, %c0_10, %c2] : memref<1x16x1090xf32, #tpu.memory_space<vmem>>, vector<1x16x1024xf32>
    %12 = vector.shape_cast %11 : vector<1x16x1024xf32> to vector<16x1024xf32>
    %c1_11 = arith.constant 1 : index
    %c0_12 = arith.constant 0 : index
    %13 = vector.load %arg4[%c1_11, %c0_12] : memref<2x1024xf32, #tpu.memory_space<vmem>>, vector<1x1024xf32>
    %14 = vector.broadcast %13 : vector<1x1024xf32> to vector<16x1024xf32>
    %15 = arith.mulf %12, %14 : vector<16x1024xf32>
    %16 = arith.truncf %15 : vector<16x1024xf32> to vector<16x1024xbf16>
    %c32 = arith.constant 32 : index
    %c0_13 = arith.constant 0 : index
    %17 = vector.load %arg6[%c32, %c0_13] : memref<144x1024xbf16, #tpu.memory_space<vmem>>, vector<16x1024xbf16>
    tpu.vector_store %arg6[%c32, %c0_13], %16 {strides = array<i32>} : memref<144x1024xbf16, #tpu.memory_space<vmem>>, vector<16x1024xbf16>,
    %c0_14 = arith.constant 0 : index
    %c0_15 = arith.constant 0 : index
    %c32_16 = arith.constant 32 : index
    %18 = vector.load %arg1[%c0_14, %c0_15, %c32_16] : memref<1x16x1090xf32, #tpu.memory_space<vmem>>, vector<1x16x1024xf32>
    %19 = vector.shape_cast %18 : vector<1x16x1024xf32> to vector<16x1024xf32>
    %c0_17 = arith.constant 0 : index
    %c0_18 = arith.constant 0 : index
    %20 = vector.load %arg4[%c0_17, %c0_18] : memref<2x1024xf32, #tpu.memory_space<vmem>>, vector<1x1024xf32>
    %21 = vector.broadcast %20 : vector<1x1024xf32> to vector<16x1024xf32>
    %22 = arith.mulf %19, %21 : vector<16x1024xf32>
    %23 = arith.truncf %22 : vector<16x1024xf32> to vector<16x1024xbf16>
    %c48 = arith.constant 48 : index
    %c0_19 = arith.constant 0 : index
    %24 = vector.load %arg6[%c48, %c0_19] : memref<144x1024xbf16, #tpu.memory_space<vmem>>, vector<16x1024xbf16>
    tpu.vector_store %arg6[%c48, %c0_19], %23 {strides = array<i32>} : memref<144x1024xbf16, #tpu.memory_space<vmem>>, vector<16x1024xbf16>,
    %c0_20 = arith.constant 0 : index
    %c0_21 = arith.constant 0 : index
    %c33 = arith.constant 33 : index
    %25 = vector.load %arg1[%c0_20, %c0_21, %c33] : memref<1x16x1090xf32, #tpu.memory_space<vmem>>, vector<1x16x1024xf32>
    %26 = vector.shape_cast %25 : vector<1x16x1024xf32> to vector<16x1024xf32>
    %27 = arith.truncf %26 : vector<16x1024xf32> to vector<16x1024xbf16>
    %c64 = arith.constant 64 : index
    %c0_22 = arith.constant 0 : index
    %28 = vector.load %arg6[%c64, %c0_22] : memref<144x1024xbf16, #tpu.memory_space<vmem>>, vector<16x1024xbf16>
    tpu.vector_store %arg6[%c64, %c0_22], %27 {strides = array<i32>} : memref<144x1024xbf16, #tpu.memory_space<vmem>>, vector<16x1024xbf16>,
    %c0_23 = arith.constant 0 : index
    %c0_24 = arith.constant 0 : index
    %c34 = arith.constant 34 : index
    %29 = vector.load %arg1[%c0_23, %c0_24, %c34] : memref<1x16x1090xf32, #tpu.memory_space<vmem>>, vector<1x16x1024xf32>
    %30 = vector.shape_cast %29 : vector<1x16x1024xf32> to vector<16x1024xf32>
    %c1_25 = arith.constant 1 : index
    %c0_26 = arith.constant 0 : index
    %31 = vector.load %arg4[%c1_25, %c0_26] : memref<2x1024xf32, #tpu.memory_space<vmem>>, vector<1x1024xf32>
    %32 = vector.broadcast %31 : vector<1x1024xf32> to vector<16x1024xf32>
    %33 = arith.mulf %30, %32 : vector<16x1024xf32>
    %34 = arith.truncf %33 : vector<16x1024xf32> to vector<16x1024xbf16>
    %c80 = arith.constant 80 : index
    %c0_27 = arith.constant 0 : index
    %35 = vector.load %arg6[%c80, %c0_27] : memref<144x1024xbf16, #tpu.memory_space<vmem>>, vector<16x1024xbf16>
    tpu.vector_store %arg6[%c80, %c0_27], %34 {strides = array<i32>} : memref<144x1024xbf16, #tpu.memory_space<vmem>>, vector<16x1024xbf16>,
    %c0_28 = arith.constant 0 : index
    %c0_29 = arith.constant 0 : index
    %c64_30 = arith.constant 64 : index
    %36 = vector.load %arg1[%c0_28, %c0_29, %c64_30] : memref<1x16x1090xf32, #tpu.memory_space<vmem>>, vector<1x16x1024xf32>
    %37 = vector.shape_cast %36 : vector<1x16x1024xf32> to vector<16x1024xf32>
    %c0_31 = arith.constant 0 : index
    %c0_32 = arith.constant 0 : index
    %38 = vector.load %arg4[%c0_31, %c0_32] : memref<2x1024xf32, #tpu.memory_space<vmem>>, vector<1x1024xf32>
    %39 = vector.broadcast %38 : vector<1x1024xf32> to vector<16x1024xf32>
    %40 = arith.mulf %37, %39 : vector<16x1024xf32>
    %41 = arith.truncf %40 : vector<16x1024xf32> to vector<16x1024xbf16>
    %c96 = arith.constant 96 : index
    %c0_33 = arith.constant 0 : index
    %42 = vector.load %arg6[%c96, %c0_33] : memref<144x1024xbf16, #tpu.memory_space<vmem>>, vector<16x1024xbf16>
    tpu.vector_store %arg6[%c96, %c0_33], %41 {strides = array<i32>} : memref<144x1024xbf16, #tpu.memory_space<vmem>>, vector<16x1024xbf16>,
    %c0_34 = arith.constant 0 : index
    %c0_35 = arith.constant 0 : index
    %c65 = arith.constant 65 : index
    %43 = vector.load %arg1[%c0_34, %c0_35, %c65] : memref<1x16x1090xf32, #tpu.memory_space<vmem>>, vector<1x16x1024xf32>
    %44 = vector.shape_cast %43 : vector<1x16x1024xf32> to vector<16x1024xf32>
    %45 = arith.truncf %44 : vector<16x1024xf32> to vector<16x1024xbf16>
    %c112 = arith.constant 112 : index
    %c0_36 = arith.constant 0 : index
    %46 = vector.load %arg6[%c112, %c0_36] : memref<144x1024xbf16, #tpu.memory_space<vmem>>, vector<16x1024xbf16>
    tpu.vector_store %arg6[%c112, %c0_36], %45 {strides = array<i32>} : memref<144x1024xbf16, #tpu.memory_space<vmem>>, vector<16x1024xbf16>,
    %c0_37 = arith.constant 0 : index
    %c0_38 = arith.constant 0 : index
    %c66 = arith.constant 66 : index
    %47 = vector.load %arg1[%c0_37, %c0_38, %c66] : memref<1x16x1090xf32, #tpu.memory_space<vmem>>, vector<1x16x1024xf32>
    %48 = vector.shape_cast %47 : vector<1x16x1024xf32> to vector<16x1024xf32>
    %c1_39 = arith.constant 1 : index
    %c0_40 = arith.constant 0 : index
    %49 = vector.load %arg4[%c1_39, %c0_40] : memref<2x1024xf32, #tpu.memory_space<vmem>>, vector<1x1024xf32>
    %50 = vector.broadcast %49 : vector<1x1024xf32> to vector<16x1024xf32>
    %51 = arith.mulf %48, %50 : vector<16x1024xf32>
    %52 = arith.truncf %51 : vector<16x1024xf32> to vector<16x1024xbf16>
    %c128 = arith.constant 128 : index
    %c0_41 = arith.constant 0 : index
    %53 = vector.load %arg6[%c128, %c0_41] : memref<144x1024xbf16, #tpu.memory_space<vmem>>, vector<16x1024xbf16>
    tpu.vector_store %arg6[%c128, %c0_41], %52 {strides = array<i32>} : memref<144x1024xbf16, #tpu.memory_space<vmem>>, vector<16x1024xbf16>,
    %c0_42 = arith.constant 0 : index
    %c0_43 = arith.constant 0 : index
    %54 = vector.load %arg6[%c0_42, %c0_43] : memref<144x1024xbf16, #tpu.memory_space<vmem>>, vector<144x1024xbf16>
    %c0_44 = arith.constant 0 : index
    %c0_45 = arith.constant 0 : index
    %55 = vector.load %arg2[%c0_44, %c0_45] : memref<32x144xbf16, #tpu.memory_space<vmem>>, vector<32x144xbf16>
    %cst = arith.constant dense<0.000000e+00> : vector<32x1024xf32>
    %56 = tpu.matmul %55, %54, %cst {dimension_numbers = #tpu.dot_dimension_numbers<[1], [0], [0], [1], [0, 0, 1, 1], [], []>} : vector<32x144xbf16>, vector<144x1024xbf16>, vector<32x1024xf32> -> vector<32x1024xf32>
    %c0_46 = arith.constant 0 : index
    %c0_47 = arith.constant 0 : index
    %57 = vector.load %arg3[%c0_46, %c0_47] : memref<32x1xf32, #tpu.memory_space<vmem>>, vector<32x1xf32>
    %58 = vector.broadcast %57 : vector<32x1xf32> to vector<32x1024xf32>
    %59 = arith.addf %56, %58 : vector<32x1024xf32>
    %cst_48 = arith.constant 0.000000e+00 : f32
    %60 = vector.broadcast %cst_48 : f32 to vector<32x1024xf32>
    %61 = arith.cmpf oge, %59, %60 : vector<32x1024xf32>
    %cst_49 = arith.constant 2.500000e-01 : f32
    %62 = vector.broadcast %cst_49 : f32 to vector<32x1024xf32>
    %63 = arith.mulf %62, %59 : vector<32x1024xf32>
    %64 = arith.select %61, %59, %63 : vector<32x1024xi1>, vector<32x1024xf32>
    %c0_50 = arith.constant 0 : index
    %c0_51 = arith.constant 0 : index
    %c0_52 = arith.constant 0 : index
    %65 = vector.load %arg5[%c0_50, %c0_51, %c0_52] : memref<1x32x1024xf32, #tpu.memory_space<vmem>>, vector<1x32x1024xf32>
    %66 = vector.shape_cast %65 : vector<1x32x1024xf32> to vector<32x1024xf32>
    %67 = vector.shape_cast %64 : vector<32x1024xf32> to vector<1x32x1024xf32>
    tpu.vector_store %arg5[%c0_50, %c0_51, %c0_52], %67 {strides = array<i32>} : memref<1x32x1024xf32, #tpu.memory_space<vmem>>, vector<1x32x1024xf32>,
    return
  }
  func.func @transform_0(%arg0: i32) -> (i32, i32, i32) {
    %c0_i32 = arith.constant 0 : i32
    %c0_i32_0 = arith.constant 0 : i32
    %c0_i32_1 = arith.constant 0 : i32
    return %arg0, %c0_i32, %c0_i32_0 : i32, i32, i32
  }
  func.func @transform_1(%arg0: i32) -> (i32, i32) {
    %c0_i32 = arith.constant 0 : i32
    %c0_i32_0 = arith.constant 0 : i32
    %c0_i32_1 = arith.constant 0 : i32
    return %c0_i32, %c0_i32_0 : i32, i32
  }
  func.func @transform_2(%arg0: i32) -> (i32, i32) {
    %c0_i32 = arith.constant 0 : i32
    %c0_i32_0 = arith.constant 0 : i32
    %c0_i32_1 = arith.constant 0 : i32
    return %c0_i32, %c0_i32_0 : i32, i32
  }
  func.func @transform_3(%arg0: i32) -> (i32, i32) {
    %c0_i32 = arith.constant 0 : i32
    %c0_i32_0 = arith.constant 0 : i32
    %c0_i32_1 = arith.constant 0 : i32
    return %c0_i32, %c0_i32_0 : i32, i32
  }
  func.func @transform_4(%arg0: i32) -> (i32, i32, i32) {
    %c0_i32 = arith.constant 0 : i32
    %c0_i32_0 = arith.constant 0 : i32
    %c0_i32_1 = arith.constant 0 : i32
    return %arg0, %c0_i32, %c0_i32_0 : i32, i32, i32
  }
}

</mosaic_0001>

<llo_original>
// kernel: _chain_impl.1
$region0: #{_chain_impl.1}
  #allocation0 [shape = 'u32[]', space=smem, size = 0x4, offset = 0x4, fixed_abs, tag = 'smem constant byte address 0x4 - core index']
  #allocation1 [shape = 'u32[72,128]{1,0:T(1,128)}', space=vmem, size = 0x9000, scoped, tag = 'internal scratch']
  #allocation2 [shape = 'bf16[144,1024]{1,0:T(8,128)(2,1)}', space=vmem, size = 0x48000, scoped, tag = 'scratch operand']
  %s0 = inlined_call_operand.vmem [shape: f32[2,16,1090], index: 0, kind: input, shape index: {}]
  %s1 = inlined_call_operand.vmem [shape: bf16[32,144], index: 1, kind: input, shape index: {}]
  %s2 = inlined_call_operand.vmem [shape: f32[32,1], index: 2, kind: input, shape index: {}]
  %s3 = inlined_call_operand.vmem [shape: f32[2,1024], index: 3, kind: input, shape index: {}]
  %s4 = inlined_call_operand.vmem [shape: f32[2,32,1024], index: 4, kind: output, shape index: {}]
  %s5 = sld [smem:[#allocation0]]
  $region49: #{_chain_impl.1} parent=0
    _
  %s7 = ssub.s32 1, %s5
  %s8 = scalar_select 0, %s7, %s5
  loop: start=0, step=1, limit=4
  $region2: #{_chain_impl.1} parent=0 // loop_pre_header
    _
  $region3: #{_chain_impl.1} parent=0 // loop_header
    %s10 = sphi 0, %s14
    %p11 = scmp.ge.s32.totalorder %s10, 4
    %s20 = sphi 0, %s22
    %s23 = sphi 0, %s20
    %s24 = sphi 0, %s23
    %s40 = sphi 0, %s24
    %s44 = sphi 0, %s44
    %s46 = sphi 0, %s44
    %s47 = sphi 0, %s46
    %s61 = sphi 0, %s47
    %s65 = sphi 0, %s65
    %s67 = sphi 0, %s65
    %s68 = sphi 0, %s67
    %s82 = sphi 0, %s68
    %s86 = sphi 0, %s86
    %s88 = sphi 0, %s86
    %s89 = sphi 0, %s88
    %s103 = sphi 0, %s89
    %s109 = sphi 0, %s111
    %s112 = sphi 0, %s109
    %s113 = sphi 0, %s112
    %s129 = sphi 0, %s113
  $region4: #{_chain_impl.1} parent=0 // loop_header_branch
    %13 = sbr.rel (%p11) target = $region8
  $region5: #{_chain_impl.1} parent=0 // loop_body
    %s15 = ssub.s32 %s10, 1
    %s16 = ssub.s32 %s10, 2
    %s17 = sadd.s32 %s10, 1
    %s18 = ssub.s32 %s10, %s17
    %p19 = scmp.eq.s32.totalorder %s18, 0
    %s21 = sadd.s32 %s20, 1
    %s22 = scalar_select %p19, %s20, %s21
    %p25 = pneg %p19
    %p26 = scmp.eq.s32.totalorder %s10, 1
    %p27 = por %p25, %p26
    %p28 = scmp.ne.s32.totalorder %s20, %s23
    %p29 = scmp.eq.s32.totalorder %s10, 0
    %p30 = por %p28, %p29
    %p31 = scmp.ne.s32.totalorder %s20, %s23
    %p32 = scmp.eq.s32.totalorder %s15, 1
    %p33 = por %p31, %p32
    %p34 = scmp.ne.s32.totalorder %s23, %s24
    %p35 = scmp.eq.s32.totalorder %s15, 0
    %p36 = por %p34, %p35
    %p37 = scmp.ne.s32.totalorder %s23, %s24
    %p38 = scmp.eq.s32.totalorder %s16, 1
    %p39 = por %p37, %p38
    %p41 = scmp.ne.s32.totalorder %s24, %s40
    %p42 = scmp.eq.s32.totalorder %s16, 0
    %p43 = por %p41, %p42
    %s45 = sadd.s32 %s44, 1
    %p48 = scmp.eq.s32.totalorder %s10, 1
    %p49 = scmp.ne.s32.totalorder %s44, %s46
    %p50 = scmp.eq.s32.totalorder %s10, 0
    %p51 = por %p49, %p50
    %p52 = scmp.ne.s32.totalorder %s44, %s46
    %p53 = scmp.eq.s32.totalorder %s15, 1
    %p54 = por %p52, %p53
    %p55 = scmp.ne.s32.totalorder %s46, %s47
    %p56 = scmp.eq.s32.totalorder %s15, 0
    %p57 = por %p55, %p56
    %p58 = scmp.ne.s32.totalorder %s46, %s47
    %p59 = scmp.eq.s32.totalorder %s16, 1
    %p60 = por %p58, %p59
    %p62 = scmp.ne.s32.totalorder %s47, %s61
    %p63 = scmp.eq.s32.totalorder %s16, 0
    %p64 = por %p62, %p63
    %s66 = sadd.s32 %s65, 1
    %p69 = scmp.eq.s32.totalorder %s10, 1
    %p70 = scmp.ne.s32.totalorder %s65, %s67
    %p71 = scmp.eq.s32.totalorder %s10, 0
    %p72 = por %p70, %p71
    %p73 = scmp.ne.s32.totalorder %s65, %s67
    %p74 = scmp.eq.s32.totalorder %s15, 1
    %p75 = por %p73, %p74
    %p76 = scmp.ne.s32.totalorder %s67, %s68
    %p77 = scmp.eq.s32.totalorder %s15, 0
    %p78 = por %p76, %p77
    %p79 = scmp.ne.s32.totalorder %s67, %s68
    %p80 = scmp.eq.s32.totalorder %s16, 1
    %p81 = por %p79, %p80
    %p83 = scmp.ne.s32.totalorder %s68, %s82
    %p84 = scmp.eq.s32.totalorder %s16, 0
    %p85 = por %p83, %p84
    %s87 = sadd.s32 %s86, 1
    %p90 = scmp.eq.s32.totalorder %s10, 1
    %p91 = scmp.ne.s32.totalorder %s86, %s88
    %p92 = scmp.eq.s32.totalorder %s10, 0
    %p93 = por %p91, %p92
    %p94 = scmp.ne.s32.totalorder %s86, %s88
    %p95 = scmp.eq.s32.totalorder %s15, 1
    %p96 = por %p94, %p95
    %p97 = scmp.ne.s32.totalorder %s88, %s89
    %p98 = scmp.eq.s32.totalorder %s15, 0
    %p99 = por %p97, %p98
    %p100 = scmp.ne.s32.totalorder %s88, %s89
    %p101 = scmp.eq.s32.totalorder %s16, 1
    %p102 = por %p100, %p101
    %p104 = scmp.ne.s32.totalorder %s89, %s103
    %p105 = scmp.eq.s32.totalorder %s16, 0
    %p106 = por %p104, %p105
    %s107 = ssub.s32 %s10, %s17
    %p108 = scmp.eq.s32.totalorder %s107, 0
    %s110 = sadd.s32 %s109, 1
    %s111 = scalar_select %p108, %s109, %s110
    %p114 = pneg %p108
    %p115 = scmp.eq.s32.totalorder %s10, 1
    %p116 = por %p114, %p115
    %p117 = scmp.ne.s32.totalorder %s109, %s112
    %p118 = scmp.eq.s32.totalorder %s10, 0
    %p119 = por %p117, %p118
    %p120 = scmp.ne.s32.totalorder %s109, %s112
    %p121 = scmp.eq.s32.totalorder %s15, 1
    %p122 = por %p120, %p121
    %p123 = scmp.ne.s32.totalorder %s112, %s113
    %p124 = scmp.eq.s32.totalorder %s15, 0
    %p125 = por %p123, %p124
    %p126 = scmp.ne.s32.totalorder %s112, %s113
    %p127 = scmp.eq.s32.totalorder %s16, 1
    %p128 = por %p126, %p127
    %p130 = scmp.ne.s32.totalorder %s113, %s129
    %p131 = scmp.eq.s32.totalorder %s16, 0
    %p132 = por %p130, %p131
    %p133 = scmp.le.s32.totalorder 1, %s10
    %p134 = scmp.lt.s32.totalorder %s10, 3
    %p135 = pnand %p133, %p134
    %p136 = pneg %p135
    // Predicated region
    $region9: #{_chain_impl.1} parent=5 // pred_check
      _
    $region10: #{_chain_impl.1} parent=5 // pred_check_branch
      %138 = sbr.rel (%p135) target = $region12
    $region11: #{_chain_impl.1} parent=5 // pred_region
      %s139 = ssub.s32 %s10, 1
      // Predicated region
      $region13: #{_chain_impl.1} parent=11 // pred_check
        %p140 = pneg %p57
      $region14: #{_chain_impl.1} parent=11 // pred_check_branch
        %142 = sbr.rel (%p140) target = $region16
      $region15: #{_chain_impl.1} parent=11 // pred_region
        _
      $region16: #{_chain_impl.1} parent=11 // pred_fallthru
        _
      // Predicated region
      $region17: #{_chain_impl.1} parent=11 // pred_check
        %p143 = pneg %p78
      $region18: #{_chain_impl.1} parent=11 // pred_check_branch
        %145 = sbr.rel (%p143) target = $region20
      $region19: #{_chain_impl.1} parent=11 // pred_region
        _
      $region20: #{_chain_impl.1} parent=11 // pred_fallthru
        _
      // Predicated region
      $region21: #{_chain_impl.1} parent=11 // pred_check
        %p146 = pneg %p99
      $region22: #{_chain_impl.1} parent=11 // pred_check_branch
        %148 = sbr.rel (%p146) target = $region24
      $region23: #{_chain_impl.1} parent=11 // pred_region
        _
      $region24: #{_chain_impl.1} parent=11 // pred_fallthru
        _
    $region12: #{_chain_impl.1} parent=5 // pred_fallthru
      _
    %p149 = scmp.lt.s32.totalorder %s10, 2
    // Predicated region
    $region25: #{_chain_impl.1} parent=5 // pred_check
      %p150 = pneg %p149
    $region26: #{_chain_impl.1} parent=5 // pred_check_branch
      %152 = sbr.rel (%p150) target = $region28
    $region27: #{_chain_impl.1} parent=5 // pred_region
      // Predicated region
      $region29: #{_chain_impl.1} parent=27 // pred_check
        %p153 = pneg %p30
      $region30: #{_chain_impl.1} parent=27 // pred_check_branch
        %155 = sbr.rel (%p153) target = $region32
      $region31: #{_chain_impl.1} parent=27 // pred_region
        %p156 = scmp.lt.s32.totalorder %s10, 1
        %s157 = scalar_select %p156, %s10, 1
        %s158 = smul.addr %s157, 18
        %s159 = smul.addr %s158, 8
        %s160 = scalar_lea.vmem %s0, %s159
      $region32: #{_chain_impl.1} parent=27 // pred_fallthru
        _
    $region28: #{_chain_impl.1} parent=5 // pred_fallthru
      _
    %p161 = scmp.le.s32.totalorder 1, %s10
    %p162 = scmp.lt.s32.totalorder %s10, 3
    %p163 = pnand %p161, %p162
    %p164 = pneg %p163
    // Predicated region
    $region33: #{_chain_impl.1} parent=5 // pred_check
      _
    $region34: #{_chain_impl.1} parent=5 // pred_check_branch
      %166 = sbr.rel (%p163) target = $region36
    $region35: #{_chain_impl.1} parent=5 // pred_region
      %s167 = ssub.s32 %s10, 1
      %p168 = scmp.lt.s32.totalorder %s15, 1
      %s169 = scalar_select %p168, %s15, 1
      %s170 = smul.addr %s169, 18
      %s171 = smul.addr %s170, 8
      %s172 = scalar_lea.vmem %s0, %s171
      %p173 = pneg %p36
      %p174 = pneg %p33
      %p175 = pneg %p57
      %p176 = pneg %p54
      %p177 = pneg %p78
      %p178 = pneg %p75
      %p179 = pneg %p99
      %p180 = pneg %p96
      %p181 = pneg %p125
      %p182 = pneg %p122
      %p183 = scmp.lt.s32.totalorder %s15, 1
      %s184 = scalar_select %p183, %s15, 1
      %s185 = smul.addr %s184, 32
      %s186 = smul.addr %s185, 8
      %s187 = scalar_lea.vmem %s4, %s186
      %p188 = scmp.lt.s32.totalorder %s15, 1
      %s189 = scalar_select %p188, %s15, 1
      %s190 = smul.addr %s189, 18
      %s191 = smul.addr %s190, 8
      %s192 = scalar_lea.vmem %s0, %s191
      %p193 = scmp.lt.s32.totalorder %s15, 1
      %s194 = scalar_select %p193, %s15, 1
      %s195 = smul.addr %s194, 32
      %s196 = smul.addr %s195, 8
      %s197 = scalar_lea.vmem %s4, %s196
      %v199 = vld [vmem:[%s192] sm:$0xff]
      %v200 = vld [vmem:[%s192 + $0x8] sm:$0xff]
      %v201 = vld [vmem:[%s192 + $0x10] sm:$0xff]
      %v202 = vld [vmem:[%s192 + $0x18] sm:$0xff]
      %v203 = vld [vmem:[%s192 + $0x20] sm:$0xff]
      %v204 = vld [vmem:[%s192 + $0x28] sm:$0xff]
      %v205 = vld [vmem:[%s192 + $0x30] sm:$0xff]
      %v206 = vld [vmem:[%s192 + $0x38] sm:$0xff]
      %v207 = vld [vmem:[%s192 + $0x48] sm:$0xff]
      %v208 = vld [vmem:[%s192 + $0x50] sm:$0xff]
      %v209 = vld [vmem:[%s192 + $0x58] sm:$0xff]
      %v210 = vld [vmem:[%s192 + $0x60] sm:$0xff]
      %v211 = vld [vmem:[%s192 + $0x68] sm:$0xff]
      %v212 = vld [vmem:[%s192 + $0x70] sm:$0xff]
      %v213 = vld [vmem:[%s192 + $0x78] sm:$0xff]
      %v214 = vld [vmem:[%s192 + $0x80] sm:$0xff]
      %v215 = vld [vmem:[%s3] ss:$2 sm:$0xff]
      %v217 = vperm.slane %v215, 0
      %v218 = vperm.slane %v215, 1
      %v219 = vperm.slane %v215, 2
      %v220 = vperm.slane %v215, 3
      %v221 = vperm.slane %v215, 4
      %v222 = vperm.slane %v215, 5
      %v223 = vperm.slane %v215, 6
      %v224 = vperm.slane %v215, 7
      %v233 = vmul.f32 %v199, %v217
      %v234 = vmul.f32 %v200, %v218
      %v235 = vmul.f32 %v201, %v219
      %v236 = vmul.f32 %v202, %v220
      %v237 = vmul.f32 %v203, %v221
      %v238 = vmul.f32 %v204, %v222
      %v239 = vmul.f32 %v205, %v223
      %v240 = vmul.f32 %v206, %v224
      %v241 = vmul.f32 %v207, %v217
      %v242 = vmul.f32 %v208, %v218
      %v243 = vmul.f32 %v209, %v219
      %v244 = vmul.f32 %v210, %v220
      %v245 = vmul.f32 %v211, %v221
      %v246 = vmul.f32 %v212, %v222
      %v247 = vmul.f32 %v213, %v223
      %v248 = vmul.f32 %v214, %v224
      %v249 = vpack.c.bf16 %v234, %v233
      %v250 = vpack.c.bf16 %v236, %v235
      %v251 = vpack.c.bf16 %v238, %v237
      %v252 = vpack.c.bf16 %v240, %v239
      %v253 = vpack.c.bf16 %v242, %v241
      %v254 = vpack.c.bf16 %v244, %v243
      %v255 = vpack.c.bf16 %v246, %v245
      %v256 = vpack.c.bf16 %v248, %v247
      %257 = vst [vmem:[#allocation2] sm:$0xff] %v249
      %258 = vst [vmem:[#allocation2 + $0x8] sm:$0xff] %v250
      %259 = vst [vmem:[#allocation2 + $0x10] sm:$0xff] %v251
      %260 = vst [vmem:[#allocation2 + $0x18] sm:$0xff] %v252
      %261 = vst [vmem:[#allocation2 + $0x20] sm:$0xff] %v253
      %262 = vst [vmem:[#allocation2 + $0x28] sm:$0xff] %v254
      %263 = vst [vmem:[#allocation2 + $0x30] sm:$0xff] %v255
      %264 = vst [vmem:[#allocation2 + $0x38] sm:$0xff] %v256
      %v265 = vld [vmem:[%s192] sm:$0xff]
      %v266 = vld [vmem:[%s192 + $0x8] sm:$0xff]
      %v267 = vld [vmem:[%s192 + $0x10] sm:$0xff]
      %v268 = vld [vmem:[%s192 + $0x18] sm:$0xff]
      %v269 = vld [vmem:[%s192 + $0x20] sm:$0xff]
      %v270 = vld [vmem:[%s192 + $0x28] sm:$0xff]
      %v271 = vld [vmem:[%s192 + $0x30] sm:$0xff]
      %v272 = vld [vmem:[%s192 + $0x38] sm:$0xff]
      %v273 = vld [vmem:[%s192 + $0x40] sm:$0xff]
      %v274 = vld [vmem:[%s192 + $0x48] sm:$0xff]
      %v275 = vld [vmem:[%s192 + $0x50] sm:$0xff]
      %v276 = vld [vmem:[%s192 + $0x58] sm:$0xff]
      %v277 = vld [vmem:[%s192 + $0x60] sm:$0xff]
      %v278 = vld [vmem:[%s192 + $0x68] sm:$0xff]
      %v279 = vld [vmem:[%s192 + $0x70] sm:$0xff]
      %v280 = vld [vmem:[%s192 + $0x78] sm:$0xff]
      %v281 = vld [vmem:[%s192 + $0x80] sm:$0xff]
      %v282 = vld [vmem:[%s192 + $0x88] sm:$0xff]
      %v283 = vpack.c.bf16 %v266, %v265
      %v284 = vpack.c.bf16 %v268, %v267
      %v285 = vpack.c.bf16 %v270, %v269
      %v286 = vpack.c.bf16 %v272, %v271
      %v287 = vpack.c.bf16 %v273, %v273
      %v288 = vpack.c.bf16 %v275, %v274
      %v289 = vpack.c.bf16 %v277, %v276
      %v290 = vpack.c.bf16 %v279, %v278
      %v291 = vpack.c.bf16 %v281, %v280
      %v292 = vpack.c.bf16 %v282, %v282
      %303 = vrot.lane.b32.xlu0 %v283, 127
      %v304 = vpop.permute.xlu0 %303
      %305 = vrot.lane.b32.xlu0 %v284, 127
      %v306 = vpop.permute.xlu0 %305
      %307 = vrot.lane.b32.xlu0 %v285, 127
      %v308 = vpop.permute.xlu0 %307
      %309 = vrot.lane.b32.xlu0 %v286, 127
      %v310 = vpop.permute.xlu0 %309
      %311 = vrot.lane.b32.xlu0 %v287, 127
      %v312 = vpop.permute.xlu0 %311
      %313 = vrot.lane.b32.xlu0 %v288, 127
      %v314 = vpop.permute.xlu0 %313
      %315 = vrot.lane.b32.xlu0 %v289, 127
      %v316 = vpop.permute.xlu0 %315
      %317 = vrot.lane.b32.xlu0 %v290, 127
      %v318 = vpop.permute.xlu0 %317
      %319 = vrot.lane.b32.xlu0 %v291, 127
      %v320 = vpop.permute.xlu0 %319
      %321 = vrot.lane.b32.xlu0 %v292, 127
      %v322 = vpop.permute.xlu0 %321
      %v323 = vrot.slane %v304, 4
      %v324 = vrot.slane %v306, 4
      %v325 = vrot.slane %v308, 4
      %v326 = vrot.slane %v310, 4
      %v327 = vrot.slane %v312, 4
      %v328 = vrot.slane %v314, 4
      %v329 = vrot.slane %v316, 4
      %v330 = vrot.slane %v318, 4
      %v331 = vrot.slane %v320, 4
      %v332 = vrot.slane %v322, 4
      %vm333 = vcmask 1043456
      %v334 = vsel %vm333, %v323, %v324
      %vm335 = vcmask 1039360
      %v336 = vsel %vm335, %v304, %v334
      %v337 = vsel %vm333, %v324, %v325
      %v338 = vsel %vm335, %v306, %v337
      %v339 = vsel %vm333, %v325, %v326
      %v340 = vsel %vm335, %v308, %v339
      %v341 = vsel %vm333, %v326, %v327
      %v342 = vsel %vm335, %v310, %v341
      %v343 = vsel %vm333, %v328, %v329
      %v344 = vsel %vm335, %v314, %v343
      %v345 = vsel %vm333, %v329, %v330
      %v346 = vsel %vm335, %v316, %v345
      %v347 = vsel %vm333, %v330, %v331
      %v348 = vsel %vm335, %v318, %v347
      %v349 = vsel %vm333, %v331, %v332
      %v350 = vsel %vm335, %v320, %v349
      %359 = vst [vmem:[#allocation2 + $0x40] sm:$0xff] %v336
      %360 = vst [vmem:[#allocation2 + $0x48] sm:$0xff] %v338
      %361 = vst [vmem:[#allocation2 + $0x50] sm:$0xff] %v340
      %362 = vst [vmem:[#allocation2 + $0x58] sm:$0xff] %v342
      %363 = vst [vmem:[#allocation2 + $0x60] sm:$0xff] %v344
      %364 = vst [vmem:[#allocation2 + $0x68] sm:$0xff] %v346
      %365 = vst [vmem:[#allocation2 + $0x70] sm:$0xff] %v348
      %366 = vst [vmem:[#allocation2 + $0x78] sm:$0xff] %v350
      %v367 = vld [vmem:[%s192] sm:$0xff]
      %v368 = vld [vmem:[%s192 + $0x8] sm:$0xff]
      %v369 = vld [vmem:[%s192 + $0x10] sm:$0xff]
      %v370 = vld [vmem:[%s192 + $0x18] sm:$0xff]
      %v371 = vld [vmem:[%s192 + $0x20] sm:$0xff]
      %v372 = vld [vmem:[%s192 + $0x28] sm:$0xff]
      %v373 = vld [vmem:[%s192 + $0x30] sm:$0xff]
      %v374 = vld [vmem:[%s192 + $0x38] sm:$0xff]
      %v375 = vld [vmem:[%s192 + $0x40] sm:$0xff]
      %v376 = vld [vmem:[%s192 + $0x48] sm:$0xff]
      %v377 = vld [vmem:[%s192 + $0x50] sm:$0xff]
      %v378 = vld [vmem:[%s192 + $0x58] sm:$0xff]
      %v379 = vld [vmem:[%s192 + $0x60] sm:$0xff]
      %v380 = vld [vmem:[%s192 + $0x68] sm:$0xff]
      %v381 = vld [vmem:[%s192 + $0x70] sm:$0xff]
      %v382 = vld [vmem:[%s192 + $0x78] sm:$0xff]
      %v383 = vld [vmem:[%s192 + $0x80] sm:$0xff]
      %v384 = vld [vmem:[%s192 + $0x88] sm:$0xff]
      %s385 = scalar_lea.vmem %s3, 1
      %v386 = vld [vmem:[%s385] ss:$2 sm:$0xff]
      %v388 = vperm.slane %v386, 0
      %v389 = vperm.slane %v386, 1
      %v390 = vperm.slane %v386, 2
      %v391 = vperm.slane %v386, 3
      %v392 = vperm.slane %v386, 4
      %v393 = vperm.slane %v386, 5
      %v394 = vperm.slane %v386, 6
      %v395 = vperm.slane %v386, 7
      %396 = vrot.lane.b32.xlu0 %v388, 2
      %v397 = vpop.permute.xlu0 %396
      %398 = vrot.lane.b32.xlu0 %v389, 2
      %v399 = vpop.permute.xlu0 %398
      %400 = vrot.lane.b32.xlu0 %v390, 2
      %v401 = vpop.permute.xlu0 %400
      %402 = vrot.lane.b32.xlu0 %v391, 2
      %v403 = vpop.permute.xlu0 %402
      %404 = vrot.lane.b32.xlu0 %v392, 2
      %v405 = vpop.permute.xlu0 %404
      %406 = vrot.lane.b32.xlu0 %v393, 2
      %v407 = vpop.permute.xlu0 %406
      %408 = vrot.lane.b32.xlu0 %v394, 2
      %v409 = vpop.permute.xlu0 %408
      %410 = vrot.lane.b32.xlu0 %v395, 2
      %v411 = vpop.permute.xlu0 %410
      %vm412 = vcmask 15360
      %v413 = vsel %vm412, %v397, %v399
      %v414 = vsel %vm412, %v399, %v401
      %v415 = vsel %vm412, %v401, %v403
      %v416 = vsel %vm412, %v403, %v405
      %v417 = vsel %vm412, %v405, %v407
      %v418 = vsel %vm412, %v407, %v409
      %v419 = vsel %vm412, %v409, %v411
      %v429 = vmul.f32 %v367, %v397
      %v430 = vmul.f32 %v368, %v413
      %v431 = vmul.f32 %v369, %v414
      %v432 = vmul.f32 %v370, %v415
      %v433 = vmul.f32 %v371, %v416
      %v434 = vmul.f32 %v372, %v417
      %v435 = vmul.f32 %v373, %v418
      %v436 = vmul.f32 %v374, %v419
      %v437 = vmul.f32 %v375, %v411
      %v438 = vmul.f32 %v376, %v397
      %v439 = vmul.f32 %v377, %v413
      %v440 = vmul.f32 %v378, %v414
      %v441 = vmul.f32 %v379, %v415
      %v442 = vmul.f32 %v380, %v416
      %v443 = vmul.f32 %v381, %v417
      %v444 = vmul.f32 %v382, %v418
      %v445 = vmul.f32 %v383, %v419
      %v446 = vmul.f32 %v384, %v411
      %v447 = vpack.c.bf16 %v430, %v429
      %v448 = vpack.c.bf16 %v432, %v431
      %v449 = vpack.c.bf16 %v434, %v433
      %v450 = vpack.c.bf16 %v436, %v435
      %v451 = vpack.c.bf16 %v437, %v437
      %v452 = vpack.c.bf16 %v439, %v438
      %v453 = vpack.c.bf16 %v441, %v440
      %v454 = vpack.c.bf16 %v443, %v442
      %v455 = vpack.c.bf16 %v445, %v444
      %v456 = vpack.c.bf16 %v446, %v446
      %467 = vrot.lane.b32.xlu0 %v447, 126
      %v468 = vpop.permute.xlu0 %467
      %469 = vrot.lane.b32.xlu0 %v448, 126
      %v470 = vpop.permute.xlu0 %469
      %471 = vrot.lane.b32.xlu0 %v449, 126
      %v472 = vpop.permute.xlu0 %471
      %473 = vrot.lane.b32.xlu0 %v450, 126
      %v474 = vpop.permute.xlu0 %473
      %475 = vrot.lane.b32.xlu0 %v451, 126
      %v476 = vpop.permute.xlu0 %475
      %477 = vrot.lane.b32.xlu0 %v452, 126
      %v478 = vpop.permute.xlu0 %477
      %479 = vrot.lane.b32.xlu0 %v453, 126
      %v480 = vpop.permute.xlu0 %479
      %481 = vrot.lane.b32.xlu0 %v454, 126
      %v482 = vpop.permute.xlu0 %481
      %483 = vrot.lane.b32.xlu0 %v455, 126
      %v484 = vpop.permute.xlu0 %483
      %485 = vrot.lane.b32.xlu0 %v456, 126
      %v486 = vpop.permute.xlu0 %485
      %v487 = vrot.slane %v468, 4
      %v488 = vrot.slane %v470, 4
      %v489 = vrot.slane %v472, 4
      %v490 = vrot.slane %v474, 4
      %v491 = vrot.slane %v476, 4
      %v492 = vrot.slane %v478, 4
      %v493 = vrot.slane %v480, 4
      %v494 = vrot.slane %v482, 4
      %v495 = vrot.slane %v484, 4
      %v496 = vrot.slane %v486, 4
      %v497 = vsel %vm333, %v487, %v488
      %vm498 = vcmask 1031168
      %v499 = vsel %vm498, %v468, %v497
      %v500 = vsel %vm333, %v488, %v489
      %v501 = vsel %vm498, %v470, %v500
      %v502 = vsel %vm333, %v489, %v490
      %v503 = vsel %vm498, %v472, %v502
      %v504 = vsel %vm333, %v490, %v491
      %v505 = vsel %vm498, %v474, %v504
      %v506 = vsel %vm333, %v492, %v493
      %v507 = vsel %vm498, %v478, %v506
      %v508 = vsel %vm333, %v493, %v494
      %v509 = vsel %vm498, %v480, %v508
      %v510 = vsel %vm333, %v494, %v495
      %v511 = vsel %vm498, %v482, %v510
      %v512 = vsel %vm333, %v495, %v496
      %v513 = vsel %vm498, %v484, %v512
      %522 = vst [vmem:[#allocation2 + $0x80] sm:$0xff] %v499
      %523 = vst [vmem:[#allocation2 + $0x88] sm:$0xff] %v501
      %524 = vst [vmem:[#allocation2 + $0x90] sm:$0xff] %v503
      %525 = vst [vmem:[#allocation2 + $0x98] sm:$0xff] %v505
      %526 = vst [vmem:[#allocation2 + $0xa0] sm:$0xff] %v507
      %527 = vst [vmem:[#allocation2 + $0xa8] sm:$0xff] %v509
      %528 = vst [vmem:[#allocation2 + $0xb0] sm:$0xff] %v511
      %529 = vst [vmem:[#allocation2 + $0xb8] sm:$0xff] %v513
      %v530 = vld [vmem:[%s192] sm:$0xff]
      %v531 = vld [vmem:[%s192 + $0x8] sm:$0xff]
      %v532 = vld [vmem:[%s192 + $0x10] sm:$0xff]
      %v533 = vld [vmem:[%s192 + $0x18] sm:$0xff]
      %v534 = vld [vmem:[%s192 + $0x20] sm:$0xff]
      %v535 = vld [vmem:[%s192 + $0x28] sm:$0xff]
      %v536 = vld [vmem:[%s192 + $0x30] sm:$0xff]
      %v537 = vld [vmem:[%s192 + $0x38] sm:$0xff]
      %v538 = vld [vmem:[%s192 + $0x40] sm:$0xff]
      %v539 = vld [vmem:[%s192 + $0x48] sm:$0xff]
      %v540 = vld [vmem:[%s192 + $0x50] sm:$0xff]
      %v541 = vld [vmem:[%s192 + $0x58] sm:$0xff]
      %v542 = vld [vmem:[%s192 + $0x60] sm:$0xff]
      %v543 = vld [vmem:[%s192 + $0x68] sm:$0xff]
      %v544 = vld [vmem:[%s192 + $0x70] sm:$0xff]
      %v545 = vld [vmem:[%s192 + $0x78] sm:$0xff]
      %v546 = vld [vmem:[%s192 + $0x80] sm:$0xff]
      %v547 = vld [vmem:[%s192 + $0x88] sm:$0xff]
      %v548 = vld [vmem:[%s3] ss:$2 sm:$0xff]
      %v550 = vperm.slane %v548, 0
      %v551 = vperm.slane %v548, 1
      %v552 = vperm.slane %v548, 2
      %v553 = vperm.slane %v548, 3
      %v554 = vperm.slane %v548, 4
      %v555 = vperm.slane %v548, 5
      %v556 = vperm.slane %v548, 6
      %v557 = vperm.slane %v548, 7
      %558 = vrot.lane.b32.xlu0 %v550, 32
      %v559 = vpop.permute.xlu0 %558
      %560 = vrot.lane.b32.xlu0 %v551, 32
      %v561 = vpop.permute.xlu0 %560
      %562 = vrot.lane.b32.xlu0 %v552, 32
      %v563 = vpop.permute.xlu0 %562
      %564 = vrot.lane.b32.xlu0 %v553, 32
      %v565 = vpop.permute.xlu0 %564
      %566 = vrot.lane.b32.xlu0 %v554, 32
      %v567 = vpop.permute.xlu0 %566
      %568 = vrot.lane.b32.xlu0 %v555, 32
      %v569 = vpop.permute.xlu0 %568
      %570 = vrot.lane.b32.xlu0 %v556, 32
      %v571 = vpop.permute.xlu0 %570
      %572 = vrot.lane.b32.xlu0 %v557, 32
      %v573 = vpop.permute.xlu0 %572
      %vm574 = vcmask 261120
      %v575 = vsel %vm574, %v559, %v561
      %v576 = vsel %vm574, %v561, %v563
      %v577 = vsel %vm574, %v563, %v565
      %v578 = vsel %vm574, %v565, %v567
      %v579 = vsel %vm574, %v567, %v569
      %v580 = vsel %vm574, %v569, %v571
      %v581 = vsel %vm574, %v571, %v573
      %v591 = vmul.f32 %v530, %v559
      %v592 = vmul.f32 %v531, %v575
      %v593 = vmul.f32 %v532, %v576
      %v594 = vmul.f32 %v533, %v577
      %v595 = vmul.f32 %v534, %v578
      %v596 = vmul.f32 %v535, %v579
      %v597 = vmul.f32 %v536, %v580
      %v598 = vmul.f32 %v537, %v581
      %v599 = vmul.f32 %v538, %v573
      %v600 = vmul.f32 %v539, %v559
      %v601 = vmul.f32 %v540, %v575
      %v602 = vmul.f32 %v541, %v576
      %v603 = vmul.f32 %v542, %v577
      %v604 = vmul.f32 %v543, %v578
      %v605 = vmul.f32 %v544, %v579
      %v606 = vmul.f32 %v545, %v580
      %v607 = vmul.f32 %v546, %v581
      %v608 = vmul.f32 %v547, %v573
      %v609 = vpack.c.bf16 %v592, %v591
      %v610 = vpack.c.bf16 %v594, %v593
      %v611 = vpack.c.bf16 %v596, %v595
      %v612 = vpack.c.bf16 %v598, %v597
      %v613 = vpack.c.bf16 %v599, %v599
      %v614 = vpack.c.bf16 %v601, %v600
      %v615 = vpack.c.bf16 %v603, %v602
      %v616 = vpack.c.bf16 %v605, %v604
      %v617 = vpack.c.bf16 %v607, %v606
      %v618 = vpack.c.bf16 %v608, %v608
      %629 = vrot.lane.b32.xlu0 %v609, 96
      %v630 = vpop.permute.xlu0 %629
      %631 = vrot.lane.b32.xlu0 %v610, 96
      %v632 = vpop.permute.xlu0 %631
      %633 = vrot.lane.b32.xlu0 %v611, 96
      %v634 = vpop.permute.xlu0 %633
      %635 = vrot.lane.b32.xlu0 %v612, 96
      %v636 = vpop.permute.xlu0 %635
      %637 = vrot.lane.b32.xlu0 %v613, 96
      %v638 = vpop.permute.xlu0 %637
      %639 = vrot.lane.b32.xlu0 %v614, 96
      %v640 = vpop.permute.xlu0 %639
      %641 = vrot.lane.b32.xlu0 %v615, 96
      %v642 = vpop.permute.xlu0 %641
      %643 = vrot.lane.b32.xlu0 %v616, 96
      %v644 = vpop.permute.xlu0 %643
      %645 = vrot.lane.b32.xlu0 %v617, 96
      %v646 = vpop.permute.xlu0 %645
      %647 = vrot.lane.b32.xlu0 %v618, 96
      %v648 = vpop.permute.xlu0 %647
      %v649 = vrot.slane %v630, 4
      %v650 = vrot.slane %v632, 4
      %v651 = vrot.slane %v634, 4
      %v652 = vrot.slane %v636, 4
      %v653 = vrot.slane %v638, 4
      %v654 = vrot.slane %v640, 4
      %v655 = vrot.slane %v642, 4
      %v656 = vrot.slane %v644, 4
      %v657 = vrot.slane %v646, 4
      %v658 = vrot.slane %v648, 4
      %v659 = vsel %vm333, %v649, %v650
      %vm660 = vcmask 785408
      %v661 = vsel %vm660, %v630, %v659
      %v662 = vsel %vm333, %v650, %v651
      %v663 = vsel %vm660, %v632, %v662
      %v664 = vsel %vm333, %v651, %v652
      %v665 = vsel %vm660, %v634, %v664
      %v666 = vsel %vm333, %v652, %v653
      %v667 = vsel %vm660, %v636, %v666
      %v668 = vsel %vm333, %v654, %v655
      %v669 = vsel %vm660, %v640, %v668
      %v670 = vsel %vm333, %v655, %v656
      %v671 = vsel %vm660, %v642, %v670
      %v672 = vsel %vm333, %v656, %v657
      %v673 = vsel %vm660, %v644, %v672
      %v674 = vsel %vm333, %v657, %v658
      %v675 = vsel %vm660, %v646, %v674
      %684 = vst [vmem:[#allocation2 + $0xc0] sm:$0xff] %v661
      %685 = vst [vmem:[#allocation2 + $0xc8] sm:$0xff] %v663
      %686 = vst [vmem:[#allocation2 + $0xd0] sm:$0xff] %v665
      %687 = vst [vmem:[#allocation2 + $0xd8] sm:$0xff] %v667
      %688 = vst [vmem:[#allocation2 + $0xe0] sm:$0xff] %v669
      %689 = vst [vmem:[#allocation2 + $0xe8] sm:$0xff] %v671
      %690 = vst [vmem:[#allocation2 + $0xf0] sm:$0xff] %v673
      %691 = vst [vmem:[#allocation2 + $0xf8] sm:$0xff] %v675
      %v692 = vld [vmem:[%s192] sm:$0xff]
      %v693 = vld [vmem:[%s192 + $0x8] sm:$0xff]
      %v694 = vld [vmem:[%s192 + $0x10] sm:$0xff]
      %v695 = vld [vmem:[%s192 + $0x18] sm:$0xff]
      %v696 = vld [vmem:[%s192 + $0x20] sm:$0xff]
      %v697 = vld [vmem:[%s192 + $0x28] sm:$0xff]
      %v698 = vld [vmem:[%s192 + $0x30] sm:$0xff]
      %v699 = vld [vmem:[%s192 + $0x38] sm:$0xff]
      %v700 = vld [vmem:[%s192 + $0x40] sm:$0xff]
      %v701 = vld [vmem:[%s192 + $0x48] sm:$0xff]
      %v702 = vld [vmem:[%s192 + $0x50] sm:$0xff]
      %v703 = vld [vmem:[%s192 + $0x58] sm:$0xff]
      %v704 = vld [vmem:[%s192 + $0x60] sm:$0xff]
      %v705 = vld [vmem:[%s192 + $0x68] sm:$0xff]
      %v706 = vld [vmem:[%s192 + $0x70] sm:$0xff]
      %v707 = vld [vmem:[%s192 + $0x78] sm:$0xff]
      %v708 = vld [vmem:[%s192 + $0x80] sm:$0xff]
      %v709 = vld [vmem:[%s192 + $0x88] sm:$0xff]
      %v710 = vpack.c.bf16 %v693, %v692
      %v711 = vpack.c.bf16 %v695, %v694
      %v712 = vpack.c.bf16 %v697, %v696
      %v713 = vpack.c.bf16 %v699, %v698
      %v714 = vpack.c.bf16 %v700, %v700
      %v715 = vpack.c.bf16 %v702, %v701
      %v716 = vpack.c.bf16 %v704, %v703
      %v717 = vpack.c.bf16 %v706, %v705
      %v718 = vpack.c.bf16 %v708, %v707
      %v719 = vpack.c.bf16 %v709, %v709
      %730 = vrot.lane.b32.xlu0 %v710, 95
      %v731 = vpop.permute.xlu0 %730
      %732 = vrot.lane.b32.xlu0 %v711, 95
      %v733 = vpop.permute.xlu0 %732
      %734 = vrot.lane.b32.xlu0 %v712, 95
      %v735 = vpop.permute.xlu0 %734
      %736 = vrot.lane.b32.xlu0 %v713, 95
      %v737 = vpop.permute.xlu0 %736
      %738 = vrot.lane.b32.xlu0 %v714, 95
      %v739 = vpop.permute.xlu0 %738
      %740 = vrot.lane.b32.xlu0 %v715, 95
      %v741 = vpop.permute.xlu0 %740
      %742 = vrot.lane.b32.xlu0 %v716, 95
      %v743 = vpop.permute.xlu0 %742
      %744 = vrot.lane.b32.xlu0 %v717, 95
      %v745 = vpop.permute.xlu0 %744
      %746 = vrot.lane.b32.xlu0 %v718, 95
      %v747 = vpop.permute.xlu0 %746
      %748 = vrot.lane.b32.xlu0 %v719, 95
      %v749 = vpop.permute.xlu0 %748
      %v750 = vrot.slane %v731, 4
      %v751 = vrot.slane %v733, 4
      %v752 = vrot.slane %v735, 4
      %v753 = vrot.slane %v737, 4
      %v754 = vrot.slane %v739, 4
      %v755 = vrot.slane %v741, 4
      %v756 = vrot.slane %v743, 4
      %v757 = vrot.slane %v745, 4
      %v758 = vrot.slane %v747, 4
      %v759 = vrot.slane %v749, 4
      %v760 = vsel %vm333, %v750, %v751
      %vm761 = vcmask 777216
      %v762 = vsel %vm761, %v731, %v760
      %v763 = vsel %vm333, %v751, %v752
      %v764 = vsel %vm761, %v733, %v763
      %v765 = vsel %vm333, %v752, %v753
      %v766 = vsel %vm761, %v735, %v765
      %v767 = vsel %vm333, %v753, %v754
      %v768 = vsel %vm761, %v737, %v767
      %v769 = vsel %vm333, %v755, %v756
      %v770 = vsel %vm761, %v741, %v769
      %v771 = vsel %vm333, %v756, %v757
      %v772 = vsel %vm761, %v743, %v771
      %v773 = vsel %vm333, %v757, %v758
      %v774 = vsel %vm761, %v745, %v773
      %v775 = vsel %vm333, %v758, %v759
      %v776 = vsel %vm761, %v747, %v775
      %785 = vst [vmem:[#allocation2 + $0x100] sm:$0xff] %v762
      %786 = vst [vmem:[#allocation2 + $0x108] sm:$0xff] %v764
      %787 = vst [vmem:[#allocation2 + $0x110] sm:$0xff] %v766
      %788 = vst [vmem:[#allocation2 + $0x118] sm:$0xff] %v768
      %789 = vst [vmem:[#allocation2 + $0x120] sm:$0xff] %v770
      %790 = vst [vmem:[#allocation2 + $0x128] sm:$0xff] %v772
      %791 = vst [vmem:[#allocation2 + $0x130] sm:$0xff] %v774
      %792 = vst [vmem:[#allocation2 + $0x138] sm:$0xff] %v776
      %v793 = vld [vmem:[%s192] sm:$0xff]
      %v794 = vld [vmem:[%s192 + $0x8] sm:$0xff]
      %v795 = vld [vmem:[%s192 + $0x10] sm:$0xff]
      %v796 = vld [vmem:[%s192 + $0x18] sm:$0xff]
      %v797 = vld [vmem:[%s192 + $0x20] sm:$0xff]
      %v798 = vld [vmem:[%s192 + $0x28] sm:$0xff]
      %v799 = vld [vmem:[%s192 + $0x30] sm:$0xff]
      %v800 = vld [vmem:[%s192 + $0x38] sm:$0xff]
      %v801 = vld [vmem:[%s192 + $0x40] sm:$0xff]
      %v802 = vld [vmem:[%s192 + $0x48] sm:$0xff]
      %v803 = vld [vmem:[%s192 + $0x50] sm:$0xff]
      %v804 = vld [vmem:[%s192 + $0x58] sm:$0xff]
      %v805 = vld [vmem:[%s192 + $0x60] sm:$0xff]
      %v806 = vld [vmem:[%s192 + $0x68] sm:$0xff]
      %v807 = vld [vmem:[%s192 + $0x70] sm:$0xff]
      %v808 = vld [vmem:[%s192 + $0x78] sm:$0xff]
      %v809 = vld [vmem:[%s192 + $0x80] sm:$0xff]
      %v810 = vld [vmem:[%s192 + $0x88] sm:$0xff]
      %v811 = vld [vmem:[%s385] ss:$2 sm:$0xff]
      %v813 = vperm.slane %v811, 0
      %v814 = vperm.slane %v811, 1
      %v815 = vperm.slane %v811, 2
      %v816 = vperm.slane %v811, 3
      %v817 = vperm.slane %v811, 4
      %v818 = vperm.slane %v811, 5
      %v819 = vperm.slane %v811, 6
      %v820 = vperm.slane %v811, 7
      %821 = vrot.lane.b32.xlu0 %v813, 34
      %v822 = vpop.permute.xlu0 %821
      %823 = vrot.lane.b32.xlu0 %v814, 34
      %v824 = vpop.permute.xlu0 %823
      %825 = vrot.lane.b32.xlu0 %v815, 34
      %v826 = vpop.permute.xlu0 %825
      %827 = vrot.lane.b32.xlu0 %v816, 34
      %v828 = vpop.permute.xlu0 %827
      %829 = vrot.lane.b32.xlu0 %v817, 34
      %v830 = vpop.permute.xlu0 %829
      %831 = vrot.lane.b32.xlu0 %v818, 34
      %v832 = vpop.permute.xlu0 %831
      %833 = vrot.lane.b32.xlu0 %v819, 34
      %v834 = vpop.permute.xlu0 %833
      %835 = vrot.lane.b32.xlu0 %v820, 34
      %v836 = vpop.permute.xlu0 %835
      %vm837 = vcmask 277504
      %v838 = vsel %vm837, %v822, %v824
      %v839 = vsel %vm837, %v824, %v826
      %v840 = vsel %vm837, %v826, %v828
      %v841 = vsel %vm837, %v828, %v830
      %v842 = vsel %vm837, %v830, %v832
      %v843 = vsel %vm837, %v832, %v834
      %v844 = vsel %vm837, %v834, %v836
      %v854 = vmul.f32 %v793, %v822
      %v855 = vmul.f32 %v794, %v838
      %v856 = vmul.f32 %v795, %v839
      %v857 = vmul.f32 %v796, %v840
      %v858 = vmul.f32 %v797, %v841
      %v859 = vmul.f32 %v798, %v842
      %v860 = vmul.f32 %v799, %v843
      %v861 = vmul.f32 %v800, %v844
      %v862 = vmul.f32 %v801, %v836
      %v863 = vmul.f32 %v802, %v822
      %v864 = vmul.f32 %v803, %v838
      %v865 = vmul.f32 %v804, %v839
      %v866 = vmul.f32 %v805, %v840
      %v867 = vmul.f32 %v806, %v841
      %v868 = vmul.f32 %v807, %v842
      %v869 = vmul.f32 %v808, %v843
      %v870 = vmul.f32 %v809, %v844
      %v871 = vmul.f32 %v810, %v836
      %v872 = vpack.c.bf16 %v855, %v854
      %v873 = vpack.c.bf16 %v857, %v856
      %v874 = vpack.c.bf16 %v859, %v858
      %v875 = vpack.c.bf16 %v861, %v860
      %v876 = vpack.c.bf16 %v862, %v862
      %v877 = vpack.c.bf16 %v864, %v863
      %v878 = vpack.c.bf16 %v866, %v865
      %v879 = vpack.c.bf16 %v868, %v867
      %v880 = vpack.c.bf16 %v870, %v869
      %v881 = vpack.c.bf16 %v871, %v871
      %892 = vrot.lane.b32.xlu0 %v872, 94
      %v893 = vpop.permute.xlu0 %892
      %894 = vrot.lane.b32.xlu0 %v873, 94
      %v895 = vpop.permute.xlu0 %894
      %896 = vrot.lane.b32.xlu0 %v874, 94
      %v897 = vpop.permute.xlu0 %896
      %898 = vrot.lane.b32.xlu0 %v875, 94
      %v899 = vpop.permute.xlu0 %898
      %900 = vrot.lane.b32.xlu0 %v876, 94
      %v901 = vpop.permute.xlu0 %900
      %902 = vrot.lane.b32.xlu0 %v877, 94
      %v903 = vpop.permute.xlu0 %902
      %904 = vrot.lane.b32.xlu0 %v878, 94
      %v905 = vpop.permute.xlu0 %904
      %906 = vrot.lane.b32.xlu0 %v879, 94
      %v907 = vpop.permute.xlu0 %906
      %908 = vrot.lane.b32.xlu0 %v880, 94
      %v909 = vpop.permute.xlu0 %908
      %910 = vrot.lane.b32.xlu0 %v881, 94
      %v911 = vpop.permute.xlu0 %910
      %v912 = vrot.slane %v893, 4
      %v913 = vrot.slane %v895, 4
      %v914 = vrot.slane %v897, 4
      %v915 = vrot.slane %v899, 4
      %v916 = vrot.slane %v901, 4
      %v917 = vrot.slane %v903, 4
      %v918 = vrot.slane %v905, 4
      %v919 = vrot.slane %v907, 4
      %v920 = vrot.slane %v909, 4
      %v921 = vrot.slane %v911, 4
      %v922 = vsel %vm333, %v912, %v913
      %vm923 = vcmask 769024
      %v924 = vsel %vm923, %v893, %v922
      %v925 = vsel %vm333, %v913, %v914
      %v926 = vsel %vm923, %v895, %v925
      %v927 = vsel %vm333, %v914, %v915
      %v928 = vsel %vm923, %v897, %v927
      %v929 = vsel %vm333, %v915, %v916
      %v930 = vsel %vm923, %v899, %v929
      %v931 = vsel %vm333, %v917, %v918
      %v932 = vsel %vm923, %v903, %v931
      %v933 = vsel %vm333, %v918, %v919
      %v934 = vsel %vm923, %v905, %v933
      %v935 = vsel %vm333, %v919, %v920
      %v936 = vsel %vm923, %v907, %v935
      %v937 = vsel %vm333, %v920, %v921
      %v938 = vsel %vm923, %v909, %v937
      %947 = vst [vmem:[#allocation2 + $0x140] sm:$0xff] %v924
      %948 = vst [vmem:[#allocation2 + $0x148] sm:$0xff] %v926
      %949 = vst [vmem:[#allocation2 + $0x150] sm:$0xff] %v928
      %950 = vst [vmem:[#allocation2 + $0x158] sm:$0xff] %v930
      %951 = vst [vmem:[#allocation2 + $0x160] sm:$0xff] %v932
      %952 = vst [vmem:[#allocation2 + $0x168] sm:$0xff] %v934
      %953 = vst [vmem:[#allocation2 + $0x170] sm:$0xff] %v936
      %954 = vst [vmem:[#allocation2 + $0x178] sm:$0xff] %v938
      %v955 = vld [vmem:[%s192] sm:$0xff]
      %v956 = vld [vmem:[%s192 + $0x8] sm:$0xff]
      %v957 = vld [vmem:[%s192 + $0x10] sm:$0xff]
      %v958 = vld [vmem:[%s192 + $0x18] sm:$0xff]
      %v959 = vld [vmem:[%s192 + $0x20] sm:$0xff]
      %v960 = vld [vmem:[%s192 + $0x28] sm:$0xff]
      %v961 = vld [vmem:[%s192 + $0x30] sm:$0xff]
      %v962 = vld [vmem:[%s192 + $0x38] sm:$0xff]
      %v963 = vld [vmem:[%s192 + $0x40] sm:$0xff]
      %v964 = vld [vmem:[%s192 + $0x48] sm:$0xff]
      %v965 = vld [vmem:[%s192 + $0x50] sm:$0xff]
      %v966 = vld [vmem:[%s192 + $0x58] sm:$0xff]
      %v967 = vld [vmem:[%s192 + $0x60] sm:$0xff]
      %v968 = vld [vmem:[%s192 + $0x68] sm:$0xff]
      %v969 = vld [vmem:[%s192 + $0x70] sm:$0xff]
      %v970 = vld [vmem:[%s192 + $0x78] sm:$0xff]
      %v971 = vld [vmem:[%s192 + $0x80] sm:$0xff]
      %v972 = vld [vmem:[%s192 + $0x88] sm:$0xff]
      %v973 = vld [vmem:[%s3] ss:$2 sm:$0xff]
      %v975 = vperm.slane %v973, 0
      %v976 = vperm.slane %v973, 1
      %v977 = vperm.slane %v973, 2
      %v978 = vperm.slane %v973, 3
      %v979 = vperm.slane %v973, 4
      %v980 = vperm.slane %v973, 5
      %v981 = vperm.slane %v973, 6
      %v982 = vperm.slane %v973, 7
      %983 = vrot.lane.b32.xlu0 %v975, 64
      %v984 = vpop.permute.xlu0 %983
      %985 = vrot.lane.b32.xlu0 %v976, 64
      %v986 = vpop.permute.xlu0 %985
      %987 = vrot.lane.b32.xlu0 %v977, 64
      %v988 = vpop.permute.xlu0 %987
      %989 = vrot.lane.b32.xlu0 %v978, 64
      %v990 = vpop.permute.xlu0 %989
      %991 = vrot.lane.b32.xlu0 %v979, 64
      %v992 = vpop.permute.xlu0 %991
      %993 = vrot.lane.b32.xlu0 %v980, 64
      %v994 = vpop.permute.xlu0 %993
      %995 = vrot.lane.b32.xlu0 %v981, 64
      %v996 = vpop.permute.xlu0 %995
      %997 = vrot.lane.b32.xlu0 %v982, 64
      %v998 = vpop.permute.xlu0 %997
      %vm999 = vcmask 523264
      %v1000 = vsel %vm999, %v984, %v986
      %v1001 = vsel %vm999, %v986, %v988
      %v1002 = vsel %vm999, %v988, %v990
      %v1003 = vsel %vm999, %v990, %v992
      %v1004 = vsel %vm999, %v992, %v994
      %v1005 = vsel %vm999, %v994, %v996
      %v1006 = vsel %vm999, %v996, %v998
      %v1016 = vmul.f32 %v955, %v984
      %v1017 = vmul.f32 %v956, %v1000
      %v1018 = vmul.f32 %v957, %v1001
      %v1019 = vmul.f32 %v958, %v1002
      %v1020 = vmul.f32 %v959, %v1003
      %v1021 = vmul.f32 %v960, %v1004
      %v1022 = vmul.f32 %v961, %v1005
      %v1023 = vmul.f32 %v962, %v1006
      %v1024 = vmul.f32 %v963, %v998
      %v1025 = vmul.f32 %v964, %v984
      %v1026 = vmul.f32 %v965, %v1000
      %v1027 = vmul.f32 %v966, %v1001
      %v1028 = vmul.f32 %v967, %v1002
      %v1029 = vmul.f32 %v968, %v1003
      %v1030 = vmul.f32 %v969, %v1004
      %v1031 = vmul.f32 %v970, %v1005
      %v1032 = vmul.f32 %v971, %v1006
      %v1033 = vmul.f32 %v972, %v998
      %v1034 = vpack.c.bf16 %v1017, %v1016
      %v1035 = vpack.c.bf16 %v1019, %v1018
      %v1036 = vpack.c.bf16 %v1021, %v1020
      %v1037 = vpack.c.bf16 %v1023, %v1022
      %v1038 = vpack.c.bf16 %v1024, %v1024
      %v1039 = vpack.c.bf16 %v1026, %v1025
      %v1040 = vpack.c.bf16 %v1028, %v1027
      %v1041 = vpack.c.bf16 %v1030, %v1029
      %v1042 = vpack.c.bf16 %v1032, %v1031
      %v1043 = vpack.c.bf16 %v1033, %v1033
      %1054 = vrot.lane.b32.xlu0 %v1034, 64
      %v1055 = vpop.permute.xlu0 %1054
      %1056 = vrot.lane.b32.xlu0 %v1035, 64
      %v1057 = vpop.permute.xlu0 %1056
      %1058 = vrot.lane.b32.xlu0 %v1036, 64
      %v1059 = vpop.permute.xlu0 %1058
      %1060 = vrot.lane.b32.xlu0 %v1037, 64
      %v1061 = vpop.permute.xlu0 %1060
      %1062 = vrot.lane.b32.xlu0 %v1038, 64
      %v1063 = vpop.permute.xlu0 %1062
      %1064 = vrot.lane.b32.xlu0 %v1039, 64
      %v1065 = vpop.permute.xlu0 %1064
      %1066 = vrot.lane.b32.xlu0 %v1040, 64
      %v1067 = vpop.permute.xlu0 %1066
      %1068 = vrot.lane.b32.xlu0 %v1041, 64
      %v1069 = vpop.permute.xlu0 %1068
      %1070 = vrot.lane.b32.xlu0 %v1042, 64
      %v1071 = vpop.permute.xlu0 %1070
      %1072 = vrot.lane.b32.xlu0 %v1043, 64
      %v1073 = vpop.permute.xlu0 %1072
      %v1074 = vrot.slane %v1055, 4
      %v1075 = vrot.slane %v1057, 4
      %v1076 = vrot.slane %v1059, 4
      %v1077 = vrot.slane %v1061, 4
      %v1078 = vrot.slane %v1063, 4
      %v1079 = vrot.slane %v1065, 4
      %v1080 = vrot.slane %v1067, 4
      %v1081 = vrot.slane %v1069, 4
      %v1082 = vrot.slane %v1071, 4
      %v1083 = vrot.slane %v1073, 4
      %v1084 = vsel %vm333, %v1074, %v1075
      %vm1085 = vcmask 523264
      %v1086 = vsel %vm1085, %v1055, %v1084
      %v1087 = vsel %vm333, %v1075, %v1076
      %v1088 = vsel %vm1085, %v1057, %v1087
      %v1089 = vsel %vm333, %v1076, %v1077
      %v1090 = vsel %vm1085, %v1059, %v1089
      %v1091 = vsel %vm333, %v1077, %v1078
      %v1092 = vsel %vm1085, %v1061, %v1091
      %v1093 = vsel %vm333, %v1079, %v1080
      %v1094 = vsel %vm1085, %v1065, %v1093
      %v1095 = vsel %vm333, %v1080, %v1081
      %v1096 = vsel %vm1085, %v1067, %v1095
      %v1097 = vsel %vm333, %v1081, %v1082
      %v1098 = vsel %vm1085, %v1069, %v1097
      %v1099 = vsel %vm333, %v1082, %v1083
      %v1100 = vsel %vm1085, %v1071, %v1099
      %1109 = vst [vmem:[#allocation2 + $0x180] sm:$0xff] %v1086
      %1110 = vst [vmem:[#allocation2 + $0x188] sm:$0xff] %v1088
      %1111 = vst [vmem:[#allocation2 + $0x190] sm:$0xff] %v1090
      %1112 = vst [vmem:[#allocation2 + $0x198] sm:$0xff] %v1092
      %1113 = vst [vmem:[#allocation2 + $0x1a0] sm:$0xff] %v1094
      %1114 = vst [vmem:[#allocation2 + $0x1a8] sm:$0xff] %v1096
      %1115 = vst [vmem:[#allocation2 + $0x1b0] sm:$0xff] %v1098
      %1116 = vst [vmem:[#allocation2 + $0x1b8] sm:$0xff] %v1100
      %v1117 = vld [vmem:[%s192] sm:$0xff]
      %v1118 = vld [vmem:[%s192 + $0x8] sm:$0xff]
      %v1119 = vld [vmem:[%s192 + $0x10] sm:$0xff]
      %v1120 = vld [vmem:[%s192 + $0x18] sm:$0xff]
      %v1121 = vld [vmem:[%s192 + $0x20] sm:$0xff]
      %v1122 = vld [vmem:[%s192 + $0x28] sm:$0xff]
      %v1123 = vld [vmem:[%s192 + $0x30] sm:$0xff]
      %v1124 = vld [vmem:[%s192 + $0x38] sm:$0xff]
      %v1125 = vld [vmem:[%s192 + $0x40] sm:$0xff]
      %v1126 = vld [vmem:[%s192 + $0x48] sm:$0xff]
      %v1127 = vld [vmem:[%s192 + $0x50] sm:$0xff]
      %v1128 = vld [vmem:[%s192 + $0x58] sm:$0xff]
      %v1129 = vld [vmem:[%s192 + $0x60] sm:$0xff]
      %v1130 = vld [vmem:[%s192 + $0x68] sm:$0xff]
      %v1131 = vld [vmem:[%s192 + $0x70] sm:$0xff]
      %v1132 = vld [vmem:[%s192 + $0x78] sm:$0xff]
      %v1133 = vld [vmem:[%s192 + $0x80] sm:$0xff]
      %v1134 = vld [vmem:[%s192 + $0x88] sm:$0xff]
      %v1135 = vpack.c.bf16 %v1118, %v1117
      %v1136 = vpack.c.bf16 %v1120, %v1119
      %v1137 = vpack.c.bf16 %v1122, %v1121
      %v1138 = vpack.c.bf16 %v1124, %v1123
      %v1139 = vpack.c.bf16 %v1125, %v1125
      %v1140 = vpack.c.bf16 %v1127, %v1126
      %v1141 = vpack.c.bf16 %v1129, %v1128
      %v1142 = vpack.c.bf16 %v1131, %v1130
      %v1143 = vpack.c.bf16 %v1133, %v1132
      %v1144 = vpack.c.bf16 %v1134, %v1134
      %1155 = vrot.lane.b32.xlu0 %v1135, 63
      %v1156 = vpop.permute.xlu0 %1155
      %1157 = vrot.lane.b32.xlu0 %v1136, 63
      %v1158 = vpop.permute.xlu0 %1157
      %1159 = vrot.lane.b32.xlu0 %v1137, 63
      %v1160 = vpop.permute.xlu0 %1159
      %1161 = vrot.lane.b32.xlu0 %v1138, 63
      %v1162 = vpop.permute.xlu0 %1161
      %1163 = vrot.lane.b32.xlu0 %v1139, 63
      %v1164 = vpop.permute.xlu0 %1163
      %1165 = vrot.lane.b32.xlu0 %v1140, 63
      %v1166 = vpop.permute.xlu0 %1165
      %1167 = vrot.lane.b32.xlu0 %v1141, 63
      %v1168 = vpop.permute.xlu0 %1167
      %1169 = vrot.lane.b32.xlu0 %v1142, 63
      %v1170 = vpop.permute.xlu0 %1169
      %1171 = vrot.lane.b32.xlu0 %v1143, 63
      %v1172 = vpop.permute.xlu0 %1171
      %1173 = vrot.lane.b32.xlu0 %v1144, 63
      %v1174 = vpop.permute.xlu0 %1173
      %v1175 = vrot.slane %v1156, 4
      %v1176 = vrot.slane %v1158, 4
      %v1177 = vrot.slane %v1160, 4
      %v1178 = vrot.slane %v1162, 4
      %v1179 = vrot.slane %v1164, 4
      %v1180 = vrot.slane %v1166, 4
      %v1181 = vrot.slane %v1168, 4
      %v1182 = vrot.slane %v1170, 4
      %v1183 = vrot.slane %v1172, 4
      %v1184 = vrot.slane %v1174, 4
      %v1185 = vsel %vm333, %v1175, %v1176
      %vm1186 = vcmask 515072
      %v1187 = vsel %vm1186, %v1156, %v1185
      %v1188 = vsel %vm333, %v1176, %v1177
      %v1189 = vsel %vm1186, %v1158, %v1188
      %v1190 = vsel %vm333, %v1177, %v1178
      %v1191 = vsel %vm1186, %v1160, %v1190
      %v1192 = vsel %vm333, %v1178, %v1179
      %v1193 = vsel %vm1186, %v1162, %v1192
      %v1194 = vsel %vm333, %v1180, %v1181
      %v1195 = vsel %vm1186, %v1166, %v1194
      %v1196 = vsel %vm333, %v1181, %v1182
      %v1197 = vsel %vm1186, %v1168, %v1196
      %v1198 = vsel %vm333, %v1182, %v1183
      %v1199 = vsel %vm1186, %v1170, %v1198
      %v1200 = vsel %vm333, %v1183, %v1184
      %v1201 = vsel %vm1186, %v1172, %v1200
      %1210 = vst [vmem:[#allocation2 + $0x1c0] sm:$0xff] %v1187
      %1211 = vst [vmem:[#allocation2 + $0x1c8] sm:$0xff] %v1189
      %1212 = vst [vmem:[#allocation2 + $0x1d0] sm:$0xff] %v1191
      %1213 = vst [vmem:[#allocation2 + $0x1d8] sm:$0xff] %v1193
      %1214 = vst [vmem:[#allocation2 + $0x1e0] sm:$0xff] %v1195
      %1215 = vst [vmem:[#allocation2 + $0x1e8] sm:$0xff] %v1197
      %1216 = vst [vmem:[#allocation2 + $0x1f0] sm:$0xff] %v1199
      %1217 = vst [vmem:[#allocation2 + $0x1f8] sm:$0xff] %v1201
      %v1218 = vld [vmem:[%s192] sm:$0xff]
      %v1219 = vld [vmem:[%s192 + $0x8] sm:$0xff]
      %v1220 = vld [vmem:[%s192 + $0x10] sm:$0xff]
      %v1221 = vld [vmem:[%s192 + $0x18] sm:$0xff]
      %v1222 = vld [vmem:[%s192 + $0x20] sm:$0xff]
      %v1223 = vld [vmem:[%s192 + $0x28] sm:$0xff]
      %v1224 = vld [vmem:[%s192 + $0x30] sm:$0xff]
      %v1225 = vld [vmem:[%s192 + $0x38] sm:$0xff]
      %v1226 = vld [vmem:[%s192 + $0x40] sm:$0xff]
      %v1227 = vld [vmem:[%s192 + $0x48] sm:$0xff]
      %v1228 = vld [vmem:[%s192 + $0x50] sm:$0xff]
      %v1229 = vld [vmem:[%s192 + $0x58] sm:$0xff]
      %v1230 = vld [vmem:[%s192 + $0x60] sm:$0xff]
      %v1231 = vld [vmem:[%s192 + $0x68] sm:$0xff]
      %v1232 = vld [vmem:[%s192 + $0x70] sm:$0xff]
      %v1233 = vld [vmem:[%s192 + $0x78] sm:$0xff]
      %v1234 = vld [vmem:[%s192 + $0x80] sm:$0xff]
      %v1235 = vld [vmem:[%s192 + $0x88] sm:$0xff]
      %v1236 = vld [vmem:[%s385] ss:$2 sm:$0xff]
      %v1238 = vperm.slane %v1236, 0
      %v1239 = vperm.slane %v1236, 1
      %v1240 = vperm.slane %v1236, 2
      %v1241 = vperm.slane %v1236, 3
      %v1242 = vperm.slane %v1236, 4
      %v1243 = vperm.slane %v1236, 5
      %v1244 = vperm.slane %v1236, 6
      %v1245 = vperm.slane %v1236, 7
      %1246 = vrot.lane.b32.xlu0 %v1238, 66
      %v1247 = vpop.permute.xlu0 %1246
      %1248 = vrot.lane.b32.xlu0 %v1239, 66
      %v1249 = vpop.permute.xlu0 %1248
      %1250 = vrot.lane.b32.xlu0 %v1240, 66
      %v1251 = vpop.permute.xlu0 %1250
      %1252 = vrot.lane.b32.xlu0 %v1241, 66
      %v1253 = vpop.permute.xlu0 %1252
      %1254 = vrot.lane.b32.xlu0 %v1242, 66
      %v1255 = vpop.permute.xlu0 %1254
      %1256 = vrot.lane.b32.xlu0 %v1243, 66
      %v1257 = vpop.permute.xlu0 %1256
      %1258 = vrot.lane.b32.xlu0 %v1244, 66
      %v1259 = vpop.permute.xlu0 %1258
      %1260 = vrot.lane.b32.xlu0 %v1245, 66
      %v1261 = vpop.permute.xlu0 %1260
      %vm1262 = vcmask 539648
      %v1263 = vsel %vm1262, %v1247, %v1249
      %v1264 = vsel %vm1262, %v1249, %v1251
      %v1265 = vsel %vm1262, %v1251, %v1253
      %v1266 = vsel %vm1262, %v1253, %v1255
      %v1267 = vsel %vm1262, %v1255, %v1257
      %v1268 = vsel %vm1262, %v1257, %v1259
      %v1269 = vsel %vm1262, %v1259, %v1261
      %v1279 = vmul.f32 %v1218, %v1247
      %v1280 = vmul.f32 %v1219, %v1263
      %v1281 = vmul.f32 %v1220, %v1264
      %v1282 = vmul.f32 %v1221, %v1265
      %v1283 = vmul.f32 %v1222, %v1266
      %v1284 = vmul.f32 %v1223, %v1267
      %v1285 = vmul.f32 %v1224, %v1268
      %v1286 = vmul.f32 %v1225, %v1269
      %v1287 = vmul.f32 %v1226, %v1261
      %v1288 = vmul.f32 %v1227, %v1247
      %v1289 = vmul.f32 %v1228, %v1263
      %v1290 = vmul.f32 %v1229, %v1264
      %v1291 = vmul.f32 %v1230, %v1265
      %v1292 = vmul.f32 %v1231, %v1266
      %v1293 = vmul.f32 %v1232, %v1267
      %v1294 = vmul.f32 %v1233, %v1268
      %v1295 = vmul.f32 %v1234, %v1269
      %v1296 = vmul.f32 %v1235, %v1261
      %v1297 = vpack.c.bf16 %v1280, %v1279
      %v1298 = vpack.c.bf16 %v1282, %v1281
      %v1299 = vpack.c.bf16 %v1284, %v1283
      %v1300 = vpack.c.bf16 %v1286, %v1285
      %v1301 = vpack.c.bf16 %v1287, %v1287
      %v1302 = vpack.c.bf16 %v1289, %v1288
      %v1303 = vpack.c.bf16 %v1291, %v1290
      %v1304 = vpack.c.bf16 %v1293, %v1292
      %v1305 = vpack.c.bf16 %v1295, %v1294
      %v1306 = vpack.c.bf16 %v1296, %v1296
      %1317 = vrot.lane.b32.xlu0 %v1297, 62
      %v1318 = vpop.permute.xlu0 %1317
      %1319 = vrot.lane.b32.xlu0 %v1298, 62
      %v1320 = vpop.permute.xlu0 %1319
      %1321 = vrot.lane.b32.xlu0 %v1299, 62
      %v1322 = vpop.permute.xlu0 %1321
      %1323 = vrot.lane.b32.xlu0 %v1300, 62
      %v1324 = vpop.permute.xlu0 %1323
      %1325 = vrot.lane.b32.xlu0 %v1301, 62
      %v1326 = vpop.permute.xlu0 %1325
      %1327 = vrot.lane.b32.xlu0 %v1302, 62
      %v1328 = vpop.permute.xlu0 %1327
      %1329 = vrot.lane.b32.xlu0 %v1303, 62
      %v1330 = vpop.permute.xlu0 %1329
      %1331 = vrot.lane.b32.xlu0 %v1304, 62
      %v1332 = vpop.permute.xlu0 %1331
      %1333 = vrot.lane.b32.xlu0 %v1305, 62
      %v1334 = vpop.permute.xlu0 %1333
      %1335 = vrot.lane.b32.xlu0 %v1306, 62
      %v1336 = vpop.permute.xlu0 %1335
      %v1337 = vrot.slane %v1318, 4
      %v1338 = vrot.slane %v1320, 4
      %v1339 = vrot.slane %v1322, 4
      %v1340 = vrot.slane %v1324, 4
      %v1341 = vrot.slane %v1326, 4
      %v1342 = vrot.slane %v1328, 4
      %v1343 = vrot.slane %v1330, 4
      %v1344 = vrot.slane %v1332, 4
      %v1345 = vrot.slane %v1334, 4
      %v1346 = vrot.slane %v1336, 4
      %v1347 = vsel %vm333, %v1337, %v1338
      %vm1348 = vcmask 506880
      %v1349 = vsel %vm1348, %v1318, %v1347
      %v1350 = vsel %vm333, %v1338, %v1339
      %v1351 = vsel %vm1348, %v1320, %v1350
      %v1352 = vsel %vm333, %v1339, %v1340
      %v1353 = vsel %vm1348, %v1322, %v1352
      %v1354 = vsel %vm333, %v1340, %v1341
      %v1355 = vsel %vm1348, %v1324, %v1354
      %v1356 = vsel %vm333, %v1342, %v1343
      %v1357 = vsel %vm1348, %v1328, %v1356
      %v1358 = vsel %vm333, %v1343, %v1344
      %v1359 = vsel %vm1348, %v1330, %v1358
      %v1360 = vsel %vm333, %v1344, %v1345
      %v1361 = vsel %vm1348, %v1332, %v1360
      %v1362 = vsel %vm333, %v1345, %v1346
      %v1363 = vsel %vm1348, %v1334, %v1362
      %1372 = vst [vmem:[#allocation2 + $0x200] sm:$0xff] %v1349
      %1373 = vst [vmem:[#allocation2 + $0x208] sm:$0xff] %v1351
      %1374 = vst [vmem:[#allocation2 + $0x210] sm:$0xff] %v1353
      %1375 = vst [vmem:[#allocation2 + $0x218] sm:$0xff] %v1355
      %1376 = vst [vmem:[#allocation2 + $0x220] sm:$0xff] %v1357
      %1377 = vst [vmem:[#allocation2 + $0x228] sm:$0xff] %v1359
      %1378 = vst [vmem:[#allocation2 + $0x230] sm:$0xff] %v1361
      %1379 = vst [vmem:[#allocation2 + $0x238] sm:$0xff] %v1363
      %v1380 = vld [vmem:[#allocation2] sm:$0xff]
      %v1381 = vld [vmem:[#allocation2 + $0x8] sm:$0xff]
      %v1382 = vld [vmem:[#allocation2 + $0x10] sm:$0xff]
      %v1383 = vld [vmem:[#allocation2 + $0x18] sm:$0xff]
      %v1384 = vld [vmem:[#allocation2 + $0x20] sm:$0xff]
      %v1385 = vld [vmem:[#allocation2 + $0x28] sm:$0xff]
      %v1386 = vld [vmem:[#allocation2 + $0x30] sm:$0xff]
      %v1387 = vld [vmem:[#allocation2 + $0x38] sm:$0xff]
      %v1388 = vld [vmem:[#allocation2 + $0x40] sm:$0xff]
      %v1389 = vld [vmem:[#allocation2 + $0x48] sm:$0xff]
      %v1390 = vld [vmem:[#allocation2 + $0x50] sm:$0xff]
      %v1391 = vld [vmem:[#allocation2 + $0x58] sm:$0xff]
      %v1392 = vld [vmem:[#allocation2 + $0x60] sm:$0xff]
      %v1393 = vld [vmem:[#allocation2 + $0x68] sm:$0xff]
      %v1394 = vld [vmem:[#allocation2 + $0x70] sm:$0xff]
      %v1395 = vld [vmem:[#allocation2 + $0x78] sm:$0xff]
      %v1396 = vld [vmem:[#allocation2 + $0x80] sm:$0xff]
      %v1397 = vld [vmem:[#allocation2 + $0x88] sm:$0xff]
      %v1398 = vld [vmem:[#allocation2 + $0x90] sm:$0xff]
      %v1399 = vld [vmem:[#allocation2 + $0x98] sm:$0xff]
      %v1400 = vld [vmem:[#allocation2 + $0xa0] sm:$0xff]
      %v1401 = vld [vmem:[#allocation2 + $0xa8] sm:$0xff]
      %v1402 = vld [vmem:[#allocation2 + $0xb0] sm:$0xff]
      %v1403 = vld [vmem:[#allocation2 + $0xb8] sm:$0xff]
      %v1404 = vld [vmem:[#allocation2 + $0xc0] sm:$0xff]
      %v1405 = vld [vmem:[#allocation2 + $0xc8] sm:$0xff]
      %v1406 = vld [vmem:[#allocation2 + $0xd0] sm:$0xff]
      %v1407 = vld [vmem:[#allocation2 + $0xd8] sm:$0xff]
      %v1408 = vld [vmem:[#allocation2 + $0xe0] sm:$0xff]
      %v1409 = vld [vmem:[#allocation2 + $0xe8] sm:$0xff]
      %v1410 = vld [vmem:[#allocation2 + $0xf0] sm:$0xff]
      %v1411 = vld [vmem:[#allocation2 + $0xf8] sm:$0xff]
      %v1412 = vld [vmem:[#allocation2 + $0x100] sm:$0xff]
      %v1413 = vld [vmem:[#allocation2 + $0x108] sm:$0xff]
      %v1414 = vld [vmem:[#allocation2 + $0x110] sm:$0xff]
      %v1415 = vld [vmem:[#allocation2 + $0x118] sm:$0xff]
      %v1416 = vld [vmem:[#allocation2 + $0x120] sm:$0xff]
      %v1417 = vld [vmem:[#allocation2 + $0x128] sm:$0xff]
      %v1418 = vld [vmem:[#allocation2 + $0x130] sm:$0xff]
      %v1419 = vld [vmem:[#allocation2 + $0x138] sm:$0xff]
      %v1420 = vld [vmem:[#allocation2 + $0x140] sm:$0xff]
      %v1421 = vld [vmem:[#allocation2 + $0x148] sm:$0xff]
      %v1422 = vld [vmem:[#allocation2 + $0x150] sm:$0xff]
      %v1423 = vld [vmem:[#allocation2 + $0x158] sm:$0xff]
      %v1424 = vld [vmem:[#allocation2 + $0x160] sm:$0xff]
      %v1425 = vld [vmem:[#allocation2 + $0x168] sm:$0xff]
      %v1426 = vld [vmem:[#allocation2 + $0x170] sm:$0xff]
      %v1427 = vld [vmem:[#allocation2 + $0x178] sm:$0xff]
      %v1428 = vld [vmem:[#allocation2 + $0x180] sm:$0xff]
      %v1429 = vld [vmem:[#allocation2 + $0x188] sm:$0xff]
      %v1430 = vld [vmem:[#allocation2 + $0x190] sm:$0xff]
      %v1431 = vld [vmem:[#allocation2 + $0x198] sm:$0xff]
      %v1432 = vld [vmem:[#allocation2 + $0x1a0] sm:$0xff]
      %v1433 = vld [vmem:[#allocation2 + $0x1a8] sm:$0xff]
      %v1434 = vld [vmem:[#allocation2 + $0x1b0] sm:$0xff]
      %v1435 = vld [vmem:[#allocation2 + $0x1b8] sm:$0xff]
      %v1436 = vld [vmem:[#allocation2 + $0x1c0] sm:$0xff]
      %v1437 = vld [vmem:[#allocation2 + $0x1c8] sm:$0xff]
      %v1438 = vld [vmem:[#allocation2 + $0x1d0] sm:$0xff]
      %v1439 = vld [vmem:[#allocation2 + $0x1d8] sm:$0xff]
      %v1440 = vld [vmem:[#allocation2 + $0x1e0] sm:$0xff]
      %v1441 = vld [vmem:[#allocation2 + $0x1e8] sm:$0xff]
      %v1442 = vld [vmem:[#allocation2 + $0x1f0] sm:$0xff]
      %v1443 = vld [vmem:[#allocation2 + $0x1f8] sm:$0xff]
      %v1444 = vld [vmem:[#allocation2 + $0x200] sm:$0xff]
      %v1445 = vld [vmem:[#allocation2 + $0x208] sm:$0xff]
      %v1446 = vld [vmem:[#allocation2 + $0x210] sm:$0xff]
      %v1447 = vld [vmem:[#allocation2 + $0x218] sm:$0xff]
      %v1448 = vld [vmem:[#allocation2 + $0x220] sm:$0xff]
      %v1449 = vld [vmem:[#allocation2 + $0x228] sm:$0xff]
      %v1450 = vld [vmem:[#allocation2 + $0x230] sm:$0xff]
      %v1451 = vld [vmem:[#allocation2 + $0x238] sm:$0xff]
      %v1452 = vld [vmem:[%s1] sm:$0xff]
      %v1453 = vld [vmem:[%s1 + $0x8] sm:$0xff]
      %v1454 = vld [vmem:[%s1 + $0x10] sm:$0xff]
      %v1455 = vld [vmem:[%s1 + $0x18] sm:$0xff]
      %v1456 = vld [vmem:[%s2] sm:$0xff]
      %v1457 = vld [vmem:[%s2 + $0x8] sm:$0xff]
      %v1458 = vld [vmem:[%s2 + $0x10] sm:$0xff]
      %v1459 = vld [vmem:[%s2 + $0x18] sm:$0xff]
      %1461 = vset.pattern.permute.xlu0 0
      %1462 = vperm.xlu0 %1461, %v1456
      %v1463 = vpop.permute.xlu0 %1462
      %1466 = vset.pattern.permute.xlu0 0
      %1467 = vperm.xlu0 %1466, %v1457
      %v1468 = vpop.permute.xlu0 %1467
      %1471 = vset.pattern.permute.xlu0 0
      %1472 = vperm.xlu0 %1471, %v1458
      %v1473 = vpop.permute.xlu0 %1472
      %1476 = vset.pattern.permute.xlu0 0
      %1477 = vperm.xlu0 %1476, %v1459
      %v1478 = vpop.permute.xlu0 %1477
      %v1484 = vunpack.c.l.b16 %v1452
      %v1485 = vunpack.c.h.b16 %v1452
      %v1486 = vunpack.c.l.b16 %v1453
      %v1487 = vunpack.c.h.b16 %v1453
      %v1488 = vunpack.c.l.b16 %v1454
      %v1489 = vunpack.c.h.b16 %v1454
      %v1490 = vunpack.c.l.b16 %v1455
      %v1491 = vunpack.c.h.b16 %v1455
      %v1492 = vpack.c.b16 %v1486, %v1484
      %v1493 = vpack.c.b16 %v1487, %v1485
      %v1494 = vpack.c.b16 %v1490, %v1488
      %v1495 = vpack.c.b16 %v1491, %v1489
      %v1570 = vunpack.c.l.b16 %v1380
      %v1571 = vunpack.c.h.b16 %v1380
      %v1572 = vunpack.c.l.b16 %v1381
      %v1573 = vunpack.c.h.b16 %v1381
      %v1574 = vunpack.c.l.b16 %v1382
      %v1575 = vunpack.c.h.b16 %v1382
      %v1576 = vunpack.c.l.b16 %v1383
      %v1577 = vunpack.c.h.b16 %v1383
      %v1578 = vunpack.c.l.b16 %v1384
      %v1579 = vunpack.c.h.b16 %v1384
      %v1580 = vunpack.c.l.b16 %v1385
      %v1581 = vunpack.c.h.b16 %v1385
      %v1582 = vunpack.c.l.b16 %v1386
      %v1583 = vunpack.c.h.b16 %v1386
      %v1584 = vunpack.c.l.b16 %v1387
      %v1585 = vunpack.c.h.b16 %v1387
      %v1586 = vunpack.c.l.b16 %v1388
      %v1587 = vunpack.c.h.b16 %v1388
      %v1588 = vunpack.c.l.b16 %v1389
      %v1589 = vunpack.c.h.b16 %v1389
      %v1590 = vunpack.c.l.b16 %v1390
      %v1591 = vunpack.c.h.b16 %v1390
      %v1592 = vunpack.c.l.b16 %v1391
      %v1593 = vunpack.c.h.b16 %v1391
      %v1594 = vunpack.c.l.b16 %v1392
      %v1595 = vunpack.c.h.b16 %v1392
      %v1596 = vunpack.c.l.b16 %v1393
      %v1597 = vunpack.c.h.b16 %v1393
      %v1598 = vunpack.c.l.b16 %v1394
      %v1599 = vunpack.c.h.b16 %v1394
      %v1600 = vunpack.c.l.b16 %v1395
      %v1601 = vunpack.c.h.b16 %v1395
      %v1602 = vunpack.c.l.b16 %v1396
      %v1603 = vunpack.c.h.b16 %v1396
      %v1604 = vunpack.c.l.b16 %v1397
      %v1605 = vunpack.c.h.b16 %v1397
      %v1606 = vunpack.c.l.b16 %v1398
      %v1607 = vunpack.c.h.b16 %v1398
      %v1608 = vunpack.c.l.b16 %v1399
      %v1609 = vunpack.c.h.b16 %v1399
      %v1610 = vunpack.c.l.b16 %v1400
      %v1611 = vunpack.c.h.b16 %v1400
      %v1612 = vunpack.c.l.b16 %v1401
      %v1613 = vunpack.c.h.b16 %v1401
      %v1614 = vunpack.c.l.b16 %v1402
      %v1615 = vunpack.c.h.b16 %v1402
      %v1616 = vunpack.c.l.b16 %v1403
      %v1617 = vunpack.c.h.b16 %v1403
      %v1618 = vunpack.c.l.b16 %v1404
      %v1619 = vunpack.c.h.b16 %v1404
      %v1620 = vunpack.c.l.b16 %v1405
      %v1621 = vunpack.c.h.b16 %v1405
      %v1622 = vunpack.c.l.b16 %v1406
      %v1623 = vunpack.c.h.b16 %v1406
      %v1624 = vunpack.c.l.b16 %v1407
      %v1625 = vunpack.c.h.b16 %v1407
      %v1626 = vunpack.c.l.b16 %v1408
      %v1627 = vunpack.c.h.b16 %v1408
      %v1628 = vunpack.c.l.b16 %v1409
      %v1629 = vunpack.c.h.b16 %v1409
      %v1630 = vunpack.c.l.b16 %v1410
      %v1631 = vunpack.c.h.b16 %v1410
      %v1632 = vunpack.c.l.b16 %v1411
      %v1633 = vunpack.c.h.b16 %v1411
      %v1634 = vunpack.c.l.b16 %v1412
      %v1635 = vunpack.c.h.b16 %v1412
      %v1636 = vunpack.c.l.b16 %v1413
      %v1637 = vunpack.c.h.b16 %v1413
      %v1638 = vunpack.c.l.b16 %v1414
      %v1639 = vunpack.c.h.b16 %v1414
      %v1640 = vunpack.c.l.b16 %v1415
      %v1641 = vunpack.c.h.b16 %v1415
      %v1642 = vunpack.c.l.b16 %v1416
      %v1643 = vunpack.c.h.b16 %v1416
      %v1644 = vunpack.c.l.b16 %v1417
      %v1645 = vunpack.c.h.b16 %v1417
      %v1646 = vunpack.c.l.b16 %v1418
      %v1647 = vunpack.c.h.b16 %v1418
      %v1648 = vunpack.c.l.b16 %v1419
      %v1649 = vunpack.c.h.b16 %v1419
      %v1650 = vunpack.c.l.b16 %v1420
      %v1651 = vunpack.c.h.b16 %v1420
      %v1652 = vunpack.c.l.b16 %v1421
      %v1653 = vunpack.c.h.b16 %v1421
      %v1654 = vunpack.c.l.b16 %v1422
      %v1655 = vunpack.c.h.b16 %v1422
      %v1656 = vunpack.c.l.b16 %v1423
      %v1657 = vunpack.c.h.b16 %v1423
      %v1658 = vunpack.c.l.b16 %v1424
      %v1659 = vunpack.c.h.b16 %v1424
      %v1660 = vunpack.c.l.b16 %v1425
      %v1661 = vunpack.c.h.b16 %v1425
      %v1662 = vunpack.c.l.b16 %v1426
      %v1663 = vunpack.c.h.b16 %v1426
      %v1664 = vunpack.c.l.b16 %v1427
      %v1665 = vunpack.c.h.b16 %v1427
      %v1666 = vunpack.c.l.b16 %v1428
      %v1667 = vunpack.c.h.b16 %v1428
      %v1668 = vunpack.c.l.b16 %v1429
      %v1669 = vunpack.c.h.b16 %v1429
      %v1670 = vunpack.c.l.b16 %v1430
      %v1671 = vunpack.c.h.b16 %v1430
      %v1672 = vunpack.c.l.b16 %v1431
      %v1673 = vunpack.c.h.b16 %v1431
      %v1674 = vunpack.c.l.b16 %v1432
      %v1675 = vunpack.c.h.b16 %v1432
      %v1676 = vunpack.c.l.b16 %v1433
      %v1677 = vunpack.c.h.b16 %v1433
      %v1678 = vunpack.c.l.b16 %v1434
      %v1679 = vunpack.c.h.b16 %v1434
      %v1680 = vunpack.c.l.b16 %v1435
      %v1681 = vunpack.c.h.b16 %v1435
      %v1682 = vunpack.c.l.b16 %v1436
      %v1683 = vunpack.c.h.b16 %v1436
      %v1684 = vunpack.c.l.b16 %v1437
      %v1685 = vunpack.c.h.b16 %v1437
      %v1686 = vunpack.c.l.b16 %v1438
      %v1687 = vunpack.c.h.b16 %v1438
      %v1688 = vunpack.c.l.b16 %v1439
      %v1689 = vunpack.c.h.b16 %v1439
      %v1690 = vunpack.c.l.b16 %v1440
      %v1691 = vunpack.c.h.b16 %v1440
      %v1692 = vunpack.c.l.b16 %v1441
      %v1693 = vunpack.c.h.b16 %v1441
      %v1694 = vunpack.c.l.b16 %v1442
      %v1695 = vunpack.c.h.b16 %v1442
      %v1696 = vunpack.c.l.b16 %v1443
      %v1697 = vunpack.c.h.b16 %v1443
      %v1698 = vunpack.c.l.b16 %v1444
      %v1699 = vunpack.c.h.b16 %v1444
      %v1700 = vunpack.c.l.b16 %v1445
      %v1701 = vunpack.c.h.b16 %v1445
      %v1702 = vunpack.c.l.b16 %v1446
      %v1703 = vunpack.c.h.b16 %v1446
      %v1704 = vunpack.c.l.b16 %v1447
      %v1705 = vunpack.c.h.b16 %v1447
      %v1706 = vunpack.c.l.b16 %v1448
      %v1707 = vunpack.c.h.b16 %v1448
      %v1708 = vunpack.c.l.b16 %v1449
      %v1709 = vunpack.c.h.b16 %v1449
      %v1710 = vunpack.c.l.b16 %v1450
      %v1711 = vunpack.c.h.b16 %v1450
      %v1712 = vunpack.c.l.b16 %v1451
      %v1713 = vunpack.c.h.b16 %v1451
      %v1714 = vpack.c.b16 %v1578, %v1570
      %v1715 = vpack.c.b16 %v1579, %v1571
      %v1716 = vpack.c.b16 %v1580, %v1572
      %v1717 = vpack.c.b16 %v1581, %v1573
      %v1718 = vpack.c.b16 %v1582, %v1574
      %v1719 = vpack.c.b16 %v1583, %v1575
      %v1720 = vpack.c.b16 %v1584, %v1576
      %v1721 = vpack.c.b16 %v1585, %v1577
      %v1722 = vpack.c.b16 %v1594, %v1586
      %v1723 = vpack.c.b16 %v1595, %v1587
      %v1724 = vpack.c.b16 %v1596, %v1588
      %v1725 = vpack.c.b16 %v1597, %v1589
      %v1726 = vpack.c.b16 %v1598, %v1590
      %v1727 = vpack.c.b16 %v1599, %v1591
      %v1728 = vpack.c.b16 %v1600, %v1592
      %v1729 = vpack.c.b16 %v1601, %v1593
      %v1730 = vpack.c.b16 %v1610, %v1602
      %v1731 = vpack.c.b16 %v1611, %v1603
      %v1732 = vpack.c.b16 %v1612, %v1604
      %v1733 = vpack.c.b16 %v1613, %v1605
      %v1734 = vpack.c.b16 %v1614, %v1606
      %v1735 = vpack.c.b16 %v1615, %v1607
      %v1736 = vpack.c.b16 %v1616, %v1608
      %v1737 = vpack.c.b16 %v1617, %v1609
      %v1738 = vpack.c.b16 %v1626, %v1618
      %v1739 = vpack.c.b16 %v1627, %v1619
      %v1740 = vpack.c.b16 %v1628, %v1620
      %v1741 = vpack.c.b16 %v1629, %v1621
      %v1742 = vpack.c.b16 %v1630, %v1622
      %v1743 = vpack.c.b16 %v1631, %v1623
      %v1744 = vpack.c.b16 %v1632, %v1624
      %v1745 = vpack.c.b16 %v1633, %v1625
      %v1746 = vpack.c.b16 %v1642, %v1634
      %v1747 = vpack.c.b16 %v1643, %v1635
      %v1748 = vpack.c.b16 %v1644, %v1636
      %v1749 = vpack.c.b16 %v1645, %v1637
      %v1750 = vpack.c.b16 %v1646, %v1638
      %v1751 = vpack.c.b16 %v1647, %v1639
      %v1752 = vpack.c.b16 %v1648, %v1640
      %v1753 = vpack.c.b16 %v1649, %v1641
      %v1754 = vpack.c.b16 %v1658, %v1650
      %v1755 = vpack.c.b16 %v1659, %v1651
      %v1756 = vpack.c.b16 %v1660, %v1652
      %v1757 = vpack.c.b16 %v1661, %v1653
      %v1758 = vpack.c.b16 %v1662, %v1654
      %v1759 = vpack.c.b16 %v1663, %v1655
      %v1760 = vpack.c.b16 %v1664, %v1656
      %v1761 = vpack.c.b16 %v1665, %v1657
      %v1762 = vpack.c.b16 %v1674, %v1666
      %v1763 = vpack.c.b16 %v1675, %v1667
      %v1764 = vpack.c.b16 %v1676, %v1668
      %v1765 = vpack.c.b16 %v1677, %v1669
      %v1766 = vpack.c.b16 %v1678, %v1670
      %v1767 = vpack.c.b16 %v1679, %v1671
      %v1768 = vpack.c.b16 %v1680, %v1672
      %v1769 = vpack.c.b16 %v1681, %v1673
      %v1770 = vpack.c.b16 %v1690, %v1682
      %v1771 = vpack.c.b16 %v1691, %v1683
      %v1772 = vpack.c.b16 %v1692, %v1684
      %v1773 = vpack.c.b16 %v1693, %v1685
      %v1774 = vpack.c.b16 %v1694, %v1686
      %v1775 = vpack.c.b16 %v1695, %v1687
      %v1776 = vpack.c.b16 %v1696, %v1688
      %v1777 = vpack.c.b16 %v1697, %v1689
      %v1778 = vpack.c.b16 %v1706, %v1698
      %v1779 = vpack.c.b16 %v1707, %v1699
      %v1780 = vpack.c.b16 %v1708, %v1700
      %v1781 = vpack.c.b16 %v1709, %v1701
      %v1782 = vpack.c.b16 %v1710, %v1702
      %v1783 = vpack.c.b16 %v1711, %v1703
      %v1784 = vpack.c.b16 %v1712, %v1704
      %v1785 = vpack.c.b16 %v1713, %v1705
      %vm1858 = vcmask 130048
      %v1860 = vsel %vm1858, %v1493, 0
      %v1863 = vsel %vm1858, %v1495, 0
      %1865 = vmatpush.bf16.msra.mxu0 %v1770
      %1866 = vmatpush.bf16.msra.mxu0 %v1762
      %1867 = vmatpush.bf16.msra.mxu0 %v1754
      %1868 = vmatpush.bf16.msra.mxu0 %v1746
      %1869 = vmatpush.bf16.msra.mxu0 %v1738
      %1870 = vmatpush.bf16.msra.mxu0 %v1730
      %1871 = vmatpush.bf16.msra.mxu0 %v1722
      %1872 = vmatpush.bf16.msra.mxu0 %v1714
      %1873 = vmatmul.bf16.gmra.mxu0 %v1492
      %v1874 = vpop.f32.mrf.mxu0
      %v1875 = vadd.f32 %v1463, %v1874
      %v1876 = vpop.f32.mrf.mxu0
      %v1877 = vadd.f32 %v1468, %v1876
      %1878 = vmatmul.bf16.gmra.mxu0 %v1494
      %v1879 = vpop.f32.mrf.mxu0
      %v1880 = vadd.f32 %v1473, %v1879
      %v1881 = vpop.f32.mrf.mxu0
      %v1882 = vadd.f32 %v1478, %v1881
      %1883 = vdwg.mxu0
      %1884 = vmatpush.bf16.msra.mxu0 0
      %1885 = vmatpush.bf16.msra.mxu0 0
      %1886 = vmatpush.bf16.msra.mxu0 0
      %1887 = vmatpush.bf16.msra.mxu0 0
      %1888 = vmatpush.bf16.msra.mxu0 0
      %1889 = vmatpush.bf16.msra.mxu0 0
      %1890 = vmatpush.bf16.msra.mxu0 0
      %1891 = vmatpush.bf16.msra.mxu0 %v1778
      %1892 = vmatmul.bf16.gmra.mxu0 %v1860
      %v1893 = vpop.f32.mrf.mxu0
      %v1894 = vadd.f32 %v1875, %v1893
      %v1895 = vpop.f32.mrf.mxu0
      %v1896 = vadd.f32 %v1877, %v1895
      %1897 = vmatmul.bf16.gmra.mxu0 %v1863
      %v1898 = vpop.f32.mrf.mxu0
      %v1899 = vadd.f32 %v1880, %v1898
      %v1900 = vpop.f32.mrf.mxu0
      %v1901 = vadd.f32 %v1882, %v1900
      %1902 = vdwg.mxu0
      %1903 = vmatpush.bf16.msra.mxu0 %v1771
      %1904 = vmatpush.bf16.msra.mxu0 %v1763
      %1905 = vmatpush.bf16.msra.mxu0 %v1755
      %1906 = vmatpush.bf16.msra.mxu0 %v1747
      %1907 = vmatpush.bf16.msra.mxu0 %v1739
      %1908 = vmatpush.bf16.msra.mxu0 %v1731
      %1909 = vmatpush.bf16.msra.mxu0 %v1723
      %1910 = vmatpush.bf16.msra.mxu0 %v1715
      %1911 = vmatmul.bf16.gmra.mxu0 %v1492
      %v1912 = vpop.f32.mrf.mxu0
      %v1913 = vadd.f32 %v1463, %v1912
      %v1914 = vpop.f32.mrf.mxu0
      %v1915 = vadd.f32 %v1468, %v1914
      %1916 = vmatmul.bf16.gmra.mxu0 %v1494
      %v1917 = vpop.f32.mrf.mxu0
      %v1918 = vadd.f32 %v1473, %v1917
      %v1919 = vpop.f32.mrf.mxu0
      %v1920 = vadd.f32 %v1478, %v1919
      %1921 = vdwg.mxu0
      %1922 = vmatpush.bf16.msra.mxu0 0
      %1923 = vmatpush.bf16.msra.mxu0 0
      %1924 = vmatpush.bf16.msra.mxu0 0
      %1925 = vmatpush.bf16.msra.mxu0 0
      %1926 = vmatpush.bf16.msra.mxu0 0
      %1927 = vmatpush.bf16.msra.mxu0 0
      %1928 = vmatpush.bf16.msra.mxu0 0
      %1929 = vmatpush.bf16.msra.mxu0 %v1779
      %1930 = vmatmul.bf16.gmra.mxu0 %v1860
      %v1931 = vpop.f32.mrf.mxu0
      %v1932 = vadd.f32 %v1913, %v1931
      %v1933 = vpop.f32.mrf.mxu0
      %v1934 = vadd.f32 %v1915, %v1933
      %1935 = vmatmul.bf16.gmra.mxu0 %v1863
      %v1936 = vpop.f32.mrf.mxu0
      %v1937 = vadd.f32 %v1918, %v1936
      %v1938 = vpop.f32.mrf.mxu0
      %v1939 = vadd.f32 %v1920, %v1938
      %1940 = vdwg.mxu0
      %1941 = vmatpush.bf16.msra.mxu0 %v1772
      %1942 = vmatpush.bf16.msra.mxu0 %v1764
      %1943 = vmatpush.bf16.msra.mxu0 %v1756
      %1944 = vmatpush.bf16.msra.mxu0 %v1748
      %1945 = vmatpush.bf16.msra.mxu0 %v1740
      %1946 = vmatpush.bf16.msra.mxu0 %v1732
      %1947 = vmatpush.bf16.msra.mxu0 %v1724
      %1948 = vmatpush.bf16.msra.mxu0 %v1716
      %1949 = vmatmul.bf16.gmra.mxu0 %v1492
      %v1950 = vpop.f32.mrf.mxu0
      %v1951 = vadd.f32 %v1463, %v1950
      %v1952 = vpop.f32.mrf.mxu0
      %v1953 = vadd.f32 %v1468, %v1952
      %1954 = vmatmul.bf16.gmra.mxu0 %v1494
      %v1955 = vpop.f32.mrf.mxu0
      %v1956 = vadd.f32 %v1473, %v1955
      %v1957 = vpop.f32.mrf.mxu0
      %v1958 = vadd.f32 %v1478, %v1957
      %1959 = vdwg.mxu0
      %1960 = vmatpush.bf16.msra.mxu0 0
      %1961 = vmatpush.bf16.msra.mxu0 0
      %1962 = vmatpush.bf16.msra.mxu0 0
      %1963 = vmatpush.bf16.msra.mxu0 0
      %1964 = vmatpush.bf16.msra.mxu0 0
      %1965 = vmatpush.bf16.msra.mxu0 0
      %1966 = vmatpush.bf16.msra.mxu0 0
      %1967 = vmatpush.bf16.msra.mxu0 %v1780
      %1968 = vmatmul.bf16.gmra.mxu0 %v1860
      %v1969 = vpop.f32.mrf.mxu0
      %v1970 = vadd.f32 %v1951, %v1969
      %v1971 = vpop.f32.mrf.mxu0
      %v1972 = vadd.f32 %v1953, %v1971
      %1973 = vmatmul.bf16.gmra.mxu0 %v1863
      %v1974 = vpop.f32.mrf.mxu0
      %v1975 = vadd.f32 %v1956, %v1974
      %v1976 = vpop.f32.mrf.mxu0
      %v1977 = vadd.f32 %v1958, %v1976
      %1978 = vdwg.mxu0
      %1979 = vmatpush.bf16.msra.mxu0 %v1773
      %1980 = vmatpush.bf16.msra.mxu0 %v1765
      %1981 = vmatpush.bf16.msra.mxu0 %v1757
      %1982 = vmatpush.bf16.msra.mxu0 %v1749
      %1983 = vmatpush.bf16.msra.mxu0 %v1741
      %1984 = vmatpush.bf16.msra.mxu0 %v1733
      %1985 = vmatpush.bf16.msra.mxu0 %v1725
      %1986 = vmatpush.bf16.msra.mxu0 %v1717
      %1987 = vmatmul.bf16.gmra.mxu0 %v1492
      %v1988 = vpop.f32.mrf.mxu0
      %v1989 = vadd.f32 %v1463, %v1988
      %v1990 = vpop.f32.mrf.mxu0
      %v1991 = vadd.f32 %v1468, %v1990
      %1992 = vmatmul.bf16.gmra.mxu0 %v1494
      %v1993 = vpop.f32.mrf.mxu0
      %v1994 = vadd.f32 %v1473, %v1993
      %v1995 = vpop.f32.mrf.mxu0
      %v1996 = vadd.f32 %v1478, %v1995
      %1997 = vdwg.mxu0
      %1998 = vmatpush.bf16.msra.mxu0 0
      %1999 = vmatpush.bf16.msra.mxu0 0
      %2000 = vmatpush.bf16.msra.mxu0 0
      %2001 = vmatpush.bf16.msra.mxu0 0
      %2002 = vmatpush.bf16.msra.mxu0 0
      %2003 = vmatpush.bf16.msra.mxu0 0
      %2004 = vmatpush.bf16.msra.mxu0 0
      %2005 = vmatpush.bf16.msra.mxu0 %v1781
      %2006 = vmatmul.bf16.gmra.mxu0 %v1860
      %v2007 = vpop.f32.mrf.mxu0
      %v2008 = vadd.f32 %v1989, %v2007
      %v2009 = vpop.f32.mrf.mxu0
      %v2010 = vadd.f32 %v1991, %v2009
      %2011 = vmatmul.bf16.gmra.mxu0 %v1863
      %v2012 = vpop.f32.mrf.mxu0
      %v2013 = vadd.f32 %v1994, %v2012
      %v2014 = vpop.f32.mrf.mxu0
      %v2015 = vadd.f32 %v1996, %v2014
      %2016 = vdwg.mxu0
      %2017 = vmatpush.bf16.msra.mxu0 %v1774
      %2018 = vmatpush.bf16.msra.mxu0 %v1766
      %2019 = vmatpush.bf16.msra.mxu0 %v1758
      %2020 = vmatpush.bf16.msra.mxu0 %v1750
      %2021 = vmatpush.bf16.msra.mxu0 %v1742
      %2022 = vmatpush.bf16.msra.mxu0 %v1734
      %2023 = vmatpush.bf16.msra.mxu0 %v1726
      %2024 = vmatpush.bf16.msra.mxu0 %v1718
      %2025 = vmatmul.bf16.gmra.mxu0 %v1492
      %v2026 = vpop.f32.mrf.mxu0
      %v2027 = vadd.f32 %v1463, %v2026
      %v2028 = vpop.f32.mrf.mxu0
      %v2029 = vadd.f32 %v1468, %v2028
      %2030 = vmatmul.bf16.gmra.mxu0 %v1494
      %v2031 = vpop.f32.mrf.mxu0
      %v2032 = vadd.f32 %v1473, %v2031
      %v2033 = vpop.f32.mrf.mxu0
      %v2034 = vadd.f32 %v1478, %v2033
      %2035 = vdwg.mxu0
      %2036 = vmatpush.bf16.msra.mxu0 0
      %2037 = vmatpush.bf16.msra.mxu0 0
      %2038 = vmatpush.bf16.msra.mxu0 0
      %2039 = vmatpush.bf16.msra.mxu0 0
      %2040 = vmatpush.bf16.msra.mxu0 0
      %2041 = vmatpush.bf16.msra.mxu0 0
      %2042 = vmatpush.bf16.msra.mxu0 0
      %2043 = vmatpush.bf16.msra.mxu0 %v1782
      %2044 = vmatmul.bf16.gmra.mxu0 %v1860
      %v2045 = vpop.f32.mrf.mxu0
      %v2046 = vadd.f32 %v2027, %v2045
      %v2047 = vpop.f32.mrf.mxu0
      %v2048 = vadd.f32 %v2029, %v2047
      %2049 = vmatmul.bf16.gmra.mxu0 %v1863
      %v2050 = vpop.f32.mrf.mxu0
      %v2051 = vadd.f32 %v2032, %v2050
      %v2052 = vpop.f32.mrf.mxu0
      %v2053 = vadd.f32 %v2034, %v2052
      %2054 = vdwg.mxu0
      %2055 = vmatpush.bf16.msra.mxu0 %v1775
      %2056 = vmatpush.bf16.msra.mxu0 %v1767
      %2057 = vmatpush.bf16.msra.mxu0 %v1759
      %2058 = vmatpush.bf16.msra.mxu0 %v1751
      %2059 = vmatpush.bf16.msra.mxu0 %v1743
      %2060 = vmatpush.bf16.msra.mxu0 %v1735
      %2061 = vmatpush.bf16.msra.mxu0 %v1727
      %2062 = vmatpush.bf16.msra.mxu0 %v1719
      %2063 = vmatmul.bf16.gmra.mxu0 %v1492
      %v2064 = vpop.f32.mrf.mxu0
      %v2065 = vadd.f32 %v1463, %v2064
      %v2066 = vpop.f32.mrf.mxu0
      %v2067 = vadd.f32 %v1468, %v2066
      %2068 = vmatmul.bf16.gmra.mxu0 %v1494
      %v2069 = vpop.f32.mrf.mxu0
      %v2070 = vadd.f32 %v1473, %v2069
      %v2071 = vpop.f32.mrf.mxu0
      %v2072 = vadd.f32 %v1478, %v2071
      %2073 = vdwg.mxu0
      %2074 = vmatpush.bf16.msra.mxu0 0
      %2075 = vmatpush.bf16.msra.mxu0 0
      %2076 = vmatpush.bf16.msra.mxu0 0
      %2077 = vmatpush.bf16.msra.mxu0 0
      %2078 = vmatpush.bf16.msra.mxu0 0
      %2079 = vmatpush.bf16.msra.mxu0 0
      %2080 = vmatpush.bf16.msra.mxu0 0
      %2081 = vmatpush.bf16.msra.mxu0 %v1783
      %2082 = vmatmul.bf16.gmra.mxu0 %v1860
      %v2083 = vpop.f32.mrf.mxu0
      %v2084 = vadd.f32 %v2065, %v2083
      %v2085 = vpop.f32.mrf.mxu0
      %v2086 = vadd.f32 %v2067, %v2085
      %2087 = vmatmul.bf16.gmra.mxu0 %v1863
      %v2088 = vpop.f32.mrf.mxu0
      %v2089 = vadd.f32 %v2070, %v2088
      %v2090 = vpop.f32.mrf.mxu0
      %v2091 = vadd.f32 %v2072, %v2090
      %2092 = vdwg.mxu0
      %2093 = vmatpush.bf16.msra.mxu0 %v1776
      %2094 = vmatpush.bf16.msra.mxu0 %v1768
      %2095 = vmatpush.bf16.msra.mxu0 %v1760
      %2096 = vmatpush.bf16.msra.mxu0 %v1752
      %2097 = vmatpush.bf16.msra.mxu0 %v1744
      %2098 = vmatpush.bf16.msra.mxu0 %v1736
      %2099 = vmatpush.bf16.msra.mxu0 %v1728
      %2100 = vmatpush.bf16.msra.mxu0 %v1720
      %2101 = vmatmul.bf16.gmra.mxu0 %v1492
      %v2102 = vpop.f32.mrf.mxu0
      %v2103 = vadd.f32 %v1463, %v2102
      %v2104 = vpop.f32.mrf.mxu0
      %v2105 = vadd.f32 %v1468, %v2104
      %2106 = vmatmul.bf16.gmra.mxu0 %v1494
      %v2107 = vpop.f32.mrf.mxu0
      %v2108 = vadd.f32 %v1473, %v2107
      %v2109 = vpop.f32.mrf.mxu0
      %v2110 = vadd.f32 %v1478, %v2109
      %2111 = vdwg.mxu0
      %2112 = vmatpush.bf16.msra.mxu0 0
      %2113 = vmatpush.bf16.msra.mxu0 0
      %2114 = vmatpush.bf16.msra.mxu0 0
      %2115 = vmatpush.bf16.msra.mxu0 0
      %2116 = vmatpush.bf16.msra.mxu0 0
      %2117 = vmatpush.bf16.msra.mxu0 0
      %2118 = vmatpush.bf16.msra.mxu0 0
      %2119 = vmatpush.bf16.msra.mxu0 %v1784
      %2120 = vmatmul.bf16.gmra.mxu0 %v1860
      %v2121 = vpop.f32.mrf.mxu0
      %v2122 = vadd.f32 %v2103, %v2121
      %v2123 = vpop.f32.mrf.mxu0
      %v2124 = vadd.f32 %v2105, %v2123
      %2125 = vmatmul.bf16.gmra.mxu0 %v1863
      %v2126 = vpop.f32.mrf.mxu0
      %v2127 = vadd.f32 %v2108, %v2126
      %v2128 = vpop.f32.mrf.mxu0
      %v2129 = vadd.f32 %v2110, %v2128
      %2130 = vdwg.mxu0
      %2131 = vmatpush.bf16.msra.mxu0 %v1777
      %2132 = vmatpush.bf16.msra.mxu0 %v1769
      %2133 = vmatpush.bf16.msra.mxu0 %v1761
      %2134 = vmatpush.bf16.msra.mxu0 %v1753
      %2135 = vmatpush.bf16.msra.mxu0 %v1745
      %2136 = vmatpush.bf16.msra.mxu0 %v1737
      %2137 = vmatpush.bf16.msra.mxu0 %v1729
      %2138 = vmatpush.bf16.msra.mxu0 %v1721
      %2139 = vmatmul.bf16.gmra.mxu0 %v1492
      %v2140 = vpop.f32.mrf.mxu0
      %v2141 = vadd.f32 %v1463, %v2140
      %v2142 = vpop.f32.mrf.mxu0
      %v2143 = vadd.f32 %v1468, %v2142
      %2144 = vmatmul.bf16.gmra.mxu0 %v1494
      %v2145 = vpop.f32.mrf.mxu0
      %v2146 = vadd.f32 %v1473, %v2145
      %v2147 = vpop.f32.mrf.mxu0
      %v2148 = vadd.f32 %v1478, %v2147
      %2149 = vdwg.mxu0
      %2150 = vmatpush.bf16.msra.mxu0 0
      %2151 = vmatpush.bf16.msra.mxu0 0
      %2152 = vmatpush.bf16.msra.mxu0 0
      %2153 = vmatpush.bf16.msra.mxu0 0
      %2154 = vmatpush.bf16.msra.mxu0 0
      %2155 = vmatpush.bf16.msra.mxu0 0
      %2156 = vmatpush.bf16.msra.mxu0 0
      %2157 = vmatpush.bf16.msra.mxu0 %v1785
      %2158 = vmatmul.bf16.gmra.mxu0 %v1860
      %v2159 = vpop.f32.mrf.mxu0
      %v2160 = vadd.f32 %v2141, %v2159
      %v2161 = vpop.f32.mrf.mxu0
      %v2162 = vadd.f32 %v2143, %v2161
      %2163 = vmatmul.bf16.gmra.mxu0 %v1863
      %v2164 = vpop.f32.mrf.mxu0
      %v2165 = vadd.f32 %v2146, %v2164
      %v2166 = vpop.f32.mrf.mxu0
      %v2167 = vadd.f32 %v2148, %v2166
      %2168 = vdwg.mxu0
      %vm2169 = vcmp.ge.f32.partialorder %v1894, 0.0
      %vm2170 = vcmp.ge.f32.partialorder %v1932, 0.0
      %vm2171 = vcmp.ge.f32.partialorder %v1970, 0.0
      %vm2172 = vcmp.ge.f32.partialorder %v2008, 0.0
      %vm2173 = vcmp.ge.f32.partialorder %v2046, 0.0
      %vm2174 = vcmp.ge.f32.partialorder %v2084, 0.0
      %vm2175 = vcmp.ge.f32.partialorder %v2122, 0.0
      %vm2176 = vcmp.ge.f32.partialorder %v2160, 0.0
      %vm2177 = vcmp.ge.f32.partialorder %v1896, 0.0
      %vm2178 = vcmp.ge.f32.partialorder %v1934, 0.0
      %vm2179 = vcmp.ge.f32.partialorder %v1972, 0.0
      %vm2180 = vcmp.ge.f32.partialorder %v2010, 0.0
      %vm2181 = vcmp.ge.f32.partialorder %v2048, 0.0
      %vm2182 = vcmp.ge.f32.partialorder %v2086, 0.0
      %vm2183 = vcmp.ge.f32.partialorder %v2124, 0.0
      %vm2184 = vcmp.ge.f32.partialorder %v2162, 0.0
      %vm2185 = vcmp.ge.f32.partialorder %v1899, 0.0
      %vm2186 = vcmp.ge.f32.partialorder %v1937, 0.0
      %vm2187 = vcmp.ge.f32.partialorder %v1975, 0.0
      %vm2188 = vcmp.ge.f32.partialorder %v2013, 0.0
      %vm2189 = vcmp.ge.f32.partialorder %v2051, 0.0
      %vm2190 = vcmp.ge.f32.partialorder %v2089, 0.0
      %vm2191 = vcmp.ge.f32.partialorder %v2127, 0.0
      %vm2192 = vcmp.ge.f32.partialorder %v2165, 0.0
      %vm2193 = vcmp.ge.f32.partialorder %v1901, 0.0
      %vm2194 = vcmp.ge.f32.partialorder %v1939, 0.0
      %vm2195 = vcmp.ge.f32.partialorder %v1977, 0.0
      %vm2196 = vcmp.ge.f32.partialorder %v2015, 0.0
      %vm2197 = vcmp.ge.f32.partialorder %v2053, 0.0
      %vm2198 = vcmp.ge.f32.partialorder %v2091, 0.0
      %vm2199 = vcmp.ge.f32.partialorder %v2129, 0.0
      %vm2200 = vcmp.ge.f32.partialorder %v2167, 0.0
      %v2201 = vmul.f32 %v1894, 0.25
      %v2202 = vmul.f32 %v1932, 0.25
      %v2203 = vmul.f32 %v1970, 0.25
      %v2204 = vmul.f32 %v2008, 0.25
      %v2205 = vmul.f32 %v2046, 0.25
      %v2206 = vmul.f32 %v2084, 0.25
      %v2207 = vmul.f32 %v2122, 0.25
      %v2208 = vmul.f32 %v2160, 0.25
      %v2209 = vmul.f32 %v1896, 0.25
      %v2210 = vmul.f32 %v1934, 0.25
      %v2211 = vmul.f32 %v1972, 0.25
      %v2212 = vmul.f32 %v2010, 0.25
      %v2213 = vmul.f32 %v2048, 0.25
      %v2214 = vmul.f32 %v2086, 0.25
      %v2215 = vmul.f32 %v2124, 0.25
      %v2216 = vmul.f32 %v2162, 0.25
      %v2217 = vmul.f32 %v1899, 0.25
      %v2218 = vmul.f32 %v1937, 0.25
      %v2219 = vmul.f32 %v1975, 0.25
      %v2220 = vmul.f32 %v2013, 0.25
      %v2221 = vmul.f32 %v2051, 0.25
      %v2222 = vmul.f32 %v2089, 0.25
      %v2223 = vmul.f32 %v2127, 0.25
      %v2224 = vmul.f32 %v2165, 0.25
      %v2225 = vmul.f32 %v1901, 0.25
      %v2226 = vmul.f32 %v1939, 0.25
      %v2227 = vmul.f32 %v1977, 0.25
      %v2228 = vmul.f32 %v2015, 0.25
      %v2229 = vmul.f32 %v2053, 0.25
      %v2230 = vmul.f32 %v2091, 0.25
      %v2231 = vmul.f32 %v2129, 0.25
      %v2232 = vmul.f32 %v2167, 0.25
      %v2233 = vsel %vm2169, %v1894, %v2201
      %v2234 = vsel %vm2170, %v1932, %v2202
      %v2235 = vsel %vm2171, %v1970, %v2203
      %v2236 = vsel %vm2172, %v2008, %v2204
      %v2237 = vsel %vm2173, %v2046, %v2205
      %v2238 = vsel %vm2174, %v2084, %v2206
      %v2239 = vsel %vm2175, %v2122, %v2207
      %v2240 = vsel %vm2176, %v2160, %v2208
      %v2241 = vsel %vm2177, %v1896, %v2209
      %v2242 = vsel %vm2178, %v1934, %v2210
      %v2243 = vsel %vm2179, %v1972, %v2211
      %v2244 = vsel %vm2180, %v2010, %v2212
      %v2245 = vsel %vm2181, %v2048, %v2213
      %v2246 = vsel %vm2182, %v2086, %v2214
      %v2247 = vsel %vm2183, %v2124, %v2215
      %v2248 = vsel %vm2184, %v2162, %v2216
      %v2249 = vsel %vm2185, %v1899, %v2217
      %v2250 = vsel %vm2186, %v1937, %v2218
      %v2251 = vsel %vm2187, %v1975, %v2219
      %v2252 = vsel %vm2188, %v2013, %v2220
      %v2253 = vsel %vm2189, %v2051, %v2221
      %v2254 = vsel %vm2190, %v2089, %v2222
      %v2255 = vsel %vm2191, %v2127, %v2223
      %v2256 = vsel %vm2192, %v2165, %v2224
      %v2257 = vsel %vm2193, %v1901, %v2225
      %v2258 = vsel %vm2194, %v1939, %v2226
      %v2259 = vsel %vm2195, %v1977, %v2227
      %v2260 = vsel %vm2196, %v2015, %v2228
      %v2261 = vsel %vm2197, %v2053, %v2229
      %v2262 = vsel %vm2198, %v2091, %v2230
      %v2263 = vsel %vm2199, %v2129, %v2231
      %v2264 = vsel %vm2200, %v2167, %v2232
      %2265 = vst [vmem:[%s197] sm:$0xff] %v2233
      %2266 = vst [vmem:[%s197 + $0x8] sm:$0xff] %v2234
      %2267 = vst [vmem:[%s197 + $0x10] sm:$0xff] %v2235
      %2268 = vst [vmem:[%s197 + $0x18] sm:$0xff] %v2236
      %2269 = vst [vmem:[%s197 + $0x20] sm:$0xff] %v2237
      %2270 = vst [vmem:[%s197 + $0x28] sm:$0xff] %v2238
      %2271 = vst [vmem:[%s197 + $0x30] sm:$0xff] %v2239
      %2272 = vst [vmem:[%s197 + $0x38] sm:$0xff] %v2240
      %2273 = vst [vmem:[%s197 + $0x40] sm:$0xff] %v2241
      %2274 = vst [vmem:[%s197 + $0x48] sm:$0xff] %v2242
      %2275 = vst [vmem:[%s197 + $0x50] sm:$0xff] %v2243
      %2276 = vst [vmem:[%s197 + $0x58] sm:$0xff] %v2244
      %2277 = vst [vmem:[%s197 + $0x60] sm:$0xff] %v2245
      %2278 = vst [vmem:[%s197 + $0x68] sm:$0xff] %v2246
      %2279 = vst [vmem:[%s197 + $0x70] sm:$0xff] %v2247
      %2280 = vst [vmem:[%s197 + $0x78] sm:$0xff] %v2248
      %2281 = vst [vmem:[%s197 + $0x80] sm:$0xff] %v2249
      %2282 = vst [vmem:[%s197 + $0x88] sm:$0xff] %v2250
      %2283 = vst [vmem:[%s197 + $0x90] sm:$0xff] %v2251
      %2284 = vst [vmem:[%s197 + $0x98] sm:$0xff] %v2252
      %2285 = vst [vmem:[%s197 + $0xa0] sm:$0xff] %v2253
      %2286 = vst [vmem:[%s197 + $0xa8] sm:$0xff] %v2254
      %2287 = vst [vmem:[%s197 + $0xb0] sm:$0xff] %v2255
      %2288 = vst [vmem:[%s197 + $0xb8] sm:$0xff] %v2256
      %2289 = vst [vmem:[%s197 + $0xc0] sm:$0xff] %v2257
      %2290 = vst [vmem:[%s197 + $0xc8] sm:$0xff] %v2258
      %2291 = vst [vmem:[%s197 + $0xd0] sm:$0xff] %v2259
      %2292 = vst [vmem:[%s197 + $0xd8] sm:$0xff] %v2260
      %2293 = vst [vmem:[%s197 + $0xe0] sm:$0xff] %v2261
      %2294 = vst [vmem:[%s197 + $0xe8] sm:$0xff] %v2262
      %2295 = vst [vmem:[%s197 + $0xf0] sm:$0xff] %v2263
      %2296 = vst [vmem:[%s197 + $0xf8] sm:$0xff] %v2264
      %p2297 = scmp.lt.s32.totalorder %s15, 1
      %s2298 = scalar_select %p2297, %s15, 1
      %s2299 = smul.addr %s2298, 32
      %s2300 = smul.addr %s2299, 8
      %s2301 = scalar_lea.vmem %s4, %s2300
      // Predicated region
      $region37: #{_chain_impl.1} parent=35 // pred_check
        %p2302 = pneg %p122
      $region38: #{_chain_impl.1} parent=35 // pred_check_branch
        %2304 = sbr.rel (%p2302) target = $region40
      $region39: #{_chain_impl.1} parent=35 // pred_region
        _
      $region40: #{_chain_impl.1} parent=35 // pred_fallthru
        _
    $region36: #{_chain_impl.1} parent=5 // pred_fallthru
      _
    %p2305 = scmp.le.s32.totalorder 2, %s10
    // Predicated region
    $region41: #{_chain_impl.1} parent=5 // pred_check
      %p2306 = pneg %p2305
    $region42: #{_chain_impl.1} parent=5 // pred_check_branch
      %2308 = sbr.rel (%p2306) target = $region44
    $region43: #{_chain_impl.1} parent=5 // pred_region
      %s2309 = ssub.s32 %s10, 2
      // Predicated region
      $region45: #{_chain_impl.1} parent=43 // pred_check
        %p2310 = pneg %p128
      $region46: #{_chain_impl.1} parent=43 // pred_check_branch
        %2312 = sbr.rel (%p2310) target = $region48
      $region47: #{_chain_impl.1} parent=43 // pred_region
        %p2313 = scmp.lt.s32.totalorder %s16, 1
        %s2314 = scalar_select %p2313, %s16, 1
        %s2315 = smul.addr %s2314, 32
        %s2316 = smul.addr %s2315, 8
        %s2317 = scalar_lea.vmem %s4, %s2316
      $region48: #{_chain_impl.1} parent=43 // pred_fallthru
        _
    $region44: #{_chain_impl.1} parent=5 // pred_fallthru
      _
  $region6: #{_chain_impl.1} parent=0 // loop_footer
    %s14 = sadd.s32 1, %s10
  $region7: #{_chain_impl.1} parent=0 // loop_footer_branch
    %9 = sbr.rel target = $region3
  $region8: #{_chain_impl.1} parent=0 // loop_exit
    _

</llo_original>
